<compile_context>
chip_gen: v7x
topology: tpu7x:2x2x1
jax: 0.10.0
libtpu: 0.0.40
codegen_flags: <defaults>
</compile_context>

<pallas_src>
import jax
import jax.numpy as jnp
from jax import lax
from jax.experimental import pallas as pl
from jax.experimental.pallas import tpu as pltpu


LANE = 128


def _round_up(n, m=LANE):
    return ((n + m - 1) // m) * m


def _pad_axis(x, axis, size):
    pad = size - x.shape[axis]
    if pad <= 0:
        return x
    widths = [(0, 0)] * x.ndim
    widths[axis] = (0, pad)
    return jnp.pad(x, widths)


def _choose_block_rows(m_pad):
    for tm in (256, 128, 64, 32, 16, 8):
        if m_pad % tm == 0:
            return tm
    return m_pad


# ----------------------- fused forward Pallas kernel ----------------------- #

def _make_kernel(h1p, h2p, mu1_out, act):
    """Kernel factory closing over the static bias-pack offsets."""
    o_c1 = 0
    o_c2 = h1p
    o_mu1 = h1p + h2p
    o_mu2 = h1p + h2p + mu1_out

    def kernel(state_ref, cam_ref,
               w_c1_ref, w_c2_ref, w_rs_mu1_ref, w_mu1_cnn_ref, w_mu2_ref,
               bias_ref, mu_ref):
        f32 = jnp.float32
        bf16 = jnp.bfloat16

        # Static (128-aligned) slices of the single packed bias buffer.
        b_c1 = bias_ref[:, o_c1:o_c1 + h1p]
        b_c2 = bias_ref[:, o_c2:o_c2 + h2p]
        b_mu1 = bias_ref[:, o_mu1:o_mu1 + mu1_out]
        b_mu2 = bias_ref[:, o_mu2:o_mu2 + act]

        # conv1 (1->9, 3x3, s2, p1) + ReLU, lowered to a dense matmul at init.
        cam = cam_ref[...].astype(bf16)
        h1 = jnp.dot(cam, w_c1_ref[...], preferred_element_type=f32) + b_c1
        h1 = jnp.maximum(h1, 0.0)

        # conv2 (9->18, 3x3, s2, p1) + ReLU, also a dense matmul.
        h2 = jnp.dot(h1.astype(bf16), w_c2_ref[...],
                     preferred_element_type=f32) + b_c2
        h2 = jnp.maximum(h2, 0.0)

        # mu head layer 1: Linear(cat(robot_state, cnn_out)) + ReLU.
        #  - the concat is replaced by two accumulating matmuls;
        #  - the activation-free robot_state Linear is already folded into
        #    w_rs_mu1 / b_mu1 at init, so state feeds mu1 directly.
        hh = (jnp.dot(state_ref[...].astype(bf16), w_rs_mu1_ref[...],
                      preferred_element_type=f32)
              + jnp.dot(h2.astype(bf16), w_mu1_cnn_ref[...],
                        preferred_element_type=f32)
              + b_mu1)
        hh = jnp.maximum(hh, 0.0)

        # mu head layer 2: Linear to the true action dim (no lane padding).
        mu = jnp.dot(hh.astype(bf16), w_mu2_ref[...],
                     preferred_element_type=f32) + b_mu2
        mu_ref[...] = mu.astype(mu_ref.dtype)

    return kernel


# --------------------------- Parameters / model ----------------------------- #

def conv_out_hw(h, w):
    oh1 = (h + 2 - 3) // 2 + 1
    ow1 = (w + 2 - 3) // 2 + 1
    oh2 = (oh1 + 2 - 3) // 2 + 1
    ow2 = (ow1 + 2 - 3) // 2 + 1
    return (oh1, ow1), (oh2, ow2)


def init_params(key, state_dim, action_size, height, width):
    """Raw (torch-layout) parameters of the module."""
    ks = jax.random.split(key, 10)

    def rnd(k, shape, scale):
        return (scale * jax.random.normal(k, shape)).astype(jnp.float32)

    (_, _), (oh2, ow2) = conv_out_hw(height, width)
    conv_out_size = 18 * oh2 * ow2
    robot_state_out = 256
    return {
        "conv1_w": rnd(ks[0], (9, 1, 3, 3), 0.1),
        "conv1_b": rnd(ks[1], (9,), 0.1),
        "conv2_w": rnd(ks[2], (18, 9, 3, 3), 0.1),
        "conv2_b": rnd(ks[3], (18,), 0.1),
        "rs_w":    rnd(ks[4], (state_dim, robot_state_out), 0.05),
        "rs_b":    rnd(ks[5], (robot_state_out,), 0.05),
        "mu1_w":   rnd(ks[6], (robot_state_out + conv_out_size, 256), 0.05),
        "mu1_b":   rnd(ks[7], (256,), 0.05),
        "mu2_w":   rnd(ks[8], (256, action_size), 0.05),
        "mu2_b":   rnd(ks[9], (action_size,), 0.05),
        "log_std": jnp.zeros((action_size,), jnp.float32),  # init_log_std = 0.0
    }


def _conv_as_dense(w, in_chw, stride, pad):
    """Exact dense [C*H*W, OC*OH*OW] matrix (NCHW flatten) of a conv layer."""
    c, h, wd = in_chw
    eye = jnp.eye(c * h * wd, dtype=jnp.float32).reshape(c * h * wd, c, h, wd)
    out = lax.conv_general_dilated(
        eye, w, window_strides=(stride, stride),
        padding=[(pad, pad), (pad, pad)],
        dimension_numbers=("NCHW", "OIHW", "NCHW"),
        precision=lax.Precision.HIGHEST)
    return out.reshape(c * h * wd, -1)


def prepare_fused_params(params, height, width):
    """One-time preprocessing: conv lowering, rs-fold, bf16 cast, bias pack."""
    (oh1, ow1), (oh2, ow2) = conv_out_hw(height, width)
    c1_out = 9 * oh1 * ow1
    c2_out = 18 * oh2 * ow2
    rs_out = params["rs_w"].shape[1]

    h1p = _round_up(c1_out)
    h2p = _round_up(c2_out)

    bf16 = jnp.bfloat16
    hp = lax.Precision.HIGHEST

    # Dense NCHW-flatten conv matrices (columns ordered (oc, oh, ow) = torch).
    w_c1 = _conv_as_dense(params["conv1_w"], (1, height, width), 2, 1)
    w_c2 = _conv_as_dense(params["conv2_w"], (9, oh1, ow1), 2, 1)
    b_c1 = jnp.repeat(params["conv1_b"], oh1 * ow1)
    b_c2 = jnp.repeat(params["conv2_b"], oh2 * ow2)

    # Split mu1 weight at torch's concat boundary; fold the activation-free
    # robot_state Linear into its half of mu1 (exact).
    w_mu1_rs = params["mu1_w"][:rs_out]
    w_mu1_cnn = params["mu1_w"][rs_out:]
    w_rs_mu1 = jnp.dot(params["rs_w"], w_mu1_rs, precision=hp)
    b_mu1 = jnp.dot(params["rs_b"], w_mu1_rs, precision=hp) + params["mu1_b"]

    # Single packed f32 bias buffer; segment offsets are all 128-aligned
    # (h1p, h2p, 256 are multiples of 128).
    bias = jnp.concatenate([
        _pad_axis(b_c1, 0, h1p),
        _pad_axis(b_c2, 0, h2p),
        b_mu1,
        params["mu2_b"],
    ]).reshape(1, -1).astype(jnp.float32)

    return {
        "w_c1": _pad_axis(w_c1, 1, h1p).astype(bf16),
        "w_c2": _pad_axis(_pad_axis(w_c2, 0, h1p), 1, h2p).astype(bf16),
        "w_rs_mu1": w_rs_mu1.astype(bf16),
        "w_mu1_cnn": _pad_axis(w_mu1_cnn, 0, h2p).astype(bf16),
        "w_mu2": params["mu2_w"].astype(bf16),
        "bias": bias,
        "log_std": params["log_std"],
    }


@jax.jit
def pi_vision_forward(fused, state, camera):
    """state: [M, state_dim], camera: [M, H, W] -> (mu [M, A], log_std [M, A])."""
    M, sd = state.shape
    h1p = fused["w_c1"].shape[1]
    h2p = fused["w_c2"].shape[1]
    mu1_out = fused["w_rs_mu1"].shape[1]
    act = fused["w_mu2"].shape[1]

    cam_flat = camera.reshape(M, -1).astype(jnp.float32)   # (h,w) raster == NCHW, C=1
    st = state.astype(jnp.float32)

    # Row-block grid over the leading (time*batch) dim.  Zero-pad rows to a
    # sublane multiple; pad rows just produce discarded outputs.
    m_pad = _round_up(M, 8)
    if m_pad != M:
        st = _pad_axis(st, 0, m_pad)
        cam_flat = _pad_axis(cam_flat, 0, m_pad)
    tm = _choose_block_rows(m_pad)
    grid = (m_pad // tm,)

    kernel = _make_kernel(h1p, h2p, mu1_out, act)

    const = lambda i: (0, 0)          # weights stay VMEM-resident across steps
    in_specs = [
        pl.BlockSpec((tm, sd), lambda i: (i, 0)),
        pl.BlockSpec((tm, cam_flat.shape[1]), lambda i: (i, 0)),
        pl.BlockSpec(fused["w_c1"].shape, const),
        pl.BlockSpec(fused["w_c2"].shape, const),
        pl.BlockSpec(fused["w_rs_mu1"].shape, const),
        pl.BlockSpec(fused["w_mu1_cnn"].shape, const),
        pl.BlockSpec(fused["w_mu2"].shape, const),
        pl.BlockSpec(fused["bias"].shape, const),
    ]
    out_specs = pl.BlockSpec((tm, act), lambda i: (i, 0))

    operands = (st, cam_flat, fused["w_c1"], fused["w_c2"], fused["w_rs_mu1"],
                fused["w_mu1_cnn"], fused["w_mu2"], fused["bias"])
    flops = 2 * m_pad * (cam_flat.shape[1] * h1p + h1p * h2p
                         + sd * mu1_out + h2p * mu1_out + mu1_out * act)
    bytes_accessed = (sum(int(x.size) * x.dtype.itemsize for x in operands)
                      + m_pad * act * 4)

    mu_pad = pl.pallas_call(
        kernel,
        out_shape=jax.ShapeDtypeStruct((m_pad, act), jnp.float32),
        grid=grid,
        in_specs=in_specs,
        out_specs=out_specs,
        compiler_params=pltpu.CompilerParams(dimension_semantics=("parallel",)),
        cost_estimate=pl.CostEstimate(flops=flops, transcendentals=0,
                                      bytes_accessed=bytes_accessed),
    )(*operands)

    mu = mu_pad[:M]
    log_std = jnp.broadcast_to(fused["log_std"][None, :], (M, act))
    return mu, log_std


# ------------------------- pure-JAX reference check ------------------------- #

def reference_forward(params, state, camera):
    B = state.shape[0]
    hp = lax.Precision.HIGHEST
    cam = camera.reshape(B, 1, camera.shape[1], camera.shape[2])
    rs = jnp.dot(state, params["rs_w"], precision=hp) + params["rs_b"]
    h1 = lax.conv_general_dilated(cam, params["conv1_w"], (2, 2), [(1, 1), (1, 1)],
                                  dimension_numbers=("NCHW", "OIHW", "NCHW"),
                                  precision=hp)
    h1 = jnp.maximum(h1 + params["conv1_b"][None, :, None, None], 0.0)
    h2 = lax.conv_general_dilated(h1, params["conv2_w"], (2, 2), [(1, 1), (1, 1)],
                                  dimension_numbers=("NCHW", "OIHW", "NCHW"),
                                  precision=hp)
    h2 = jnp.maximum(h2 + params["conv2_b"][None, :, None, None], 0.0)
    cnn_out = h2.reshape(B, -1)
    head_in = jnp.concatenate([rs, cnn_out], axis=-1)
    hh = jnp.maximum(jnp.dot(head_in, params["mu1_w"], precision=hp)
                     + params["mu1_b"], 0.0)
    mu = jnp.dot(hh, params["mu2_w"], precision=hp) + params["mu2_b"]
    log_std = jnp.broadcast_to(params["log_std"][None, :],
                               (B, params["log_std"].shape[0]))
    return mu, log_std


# ---------------------------------- main ------------------------------------ #

if __name__ == "__main__":
    B = 2                 # leading dim (lead_dim = [B])
    H = W = 16            # observation_shape.goal.camera
    state_dim = 8         # observation_shape.state[0]
    action_size = 4

    key = jax.random.PRNGKey(0)
    k_params, k_state, k_cam = jax.random.split(key, 3)

    params = init_params(k_params, state_dim, action_size, H, W)
    fused = prepare_fused_params(params, H, W)       # one-time preprocessing
    state = jax.random.normal(k_state, (B, state_dim), dtype=jnp.float32)
    camera = jax.random.normal(k_cam, (B, H, W), dtype=jnp.float32)

    mu, log_std = pi_vision_forward(fused, state, camera)
    jax.block_until_ready((mu, log_std))

    assert mu.shape == (B, action_size), mu.shape
    assert log_std.shape == (B, action_size), log_std.shape

    # Numerical check against the pure-JAX (torch-layout) f32 reference.
    # Tolerance re-derived for bf16 MXU operands (f32 accumulation).
    mu_ref, log_std_ref = reference_forward(params, state, camera)
    max_err = float(jnp.max(jnp.abs(mu - mu_ref)))
    ref_scale = float(jnp.max(jnp.abs(mu_ref)))
    assert max_err < 2e-2 * max(1.0, ref_scale), (max_err, ref_scale)
    assert bool(jnp.all(log_std == log_std_ref))

    print("KERNEL_OK")
</pallas_src>

<mosaic_0001>
module attributes {stable_mosaic.version = 11 : i64} {
  func.func @kernel(%arg0: i32, %arg1: memref<8x8xf32, #tpu.memory_space<vmem>>, %arg2: memref<8x256xf32, #tpu.memory_space<vmem>>, %arg3: memref<256x640xbf16, #tpu.memory_space<vmem>>, %arg4: memref<640x384xbf16, #tpu.memory_space<vmem>>, %arg5: memref<8x256xbf16, #tpu.memory_space<vmem>>, %arg6: memref<384x256xbf16, #tpu.memory_space<vmem>>, %arg7: memref<256x4xbf16, #tpu.memory_space<vmem>>, %arg8: memref<1x1284xf32, #tpu.memory_space<vmem>>, %arg9: memref<8x4xf32, #tpu.memory_space<vmem>>) attributes {dimension_semantics = [#tpu.dimension_semantics<parallel>], iteration_bounds = array<i64: 1>, scalar_prefetch = 0 : i64, scratch_operands = 0 : i64, tpu.core_type = #tpu.core_type<tc>, window_params = [{transform_indices = @transform_0, window_bounds = array<i64: 8, 8>}, {transform_indices = @transform_1, window_bounds = array<i64: 8, 256>}, {pipeline_mode = #tpu.pipeline_mode<synchronous>, transform_indices = @transform_2, window_bounds = array<i64: 256, 640>}, {pipeline_mode = #tpu.pipeline_mode<synchronous>, transform_indices = @transform_3, window_bounds = array<i64: 640, 384>}, {pipeline_mode = #tpu.pipeline_mode<synchronous>, transform_indices = @transform_4, window_bounds = array<i64: 8, 256>}, {pipeline_mode = #tpu.pipeline_mode<synchronous>, transform_indices = @transform_5, window_bounds = array<i64: 384, 256>}, {pipeline_mode = #tpu.pipeline_mode<synchronous>, transform_indices = @transform_6, window_bounds = array<i64: 256, 4>}, {pipeline_mode = #tpu.pipeline_mode<synchronous>, transform_indices = @transform_7, window_bounds = array<i64: 1, 1284>}, {transform_indices = @transform_8, window_bounds = array<i64: 8, 4>}]} {
    %c0 = arith.constant 0 : index
    %c0_0 = arith.constant 0 : index
    %0 = vector.load %arg8[%c0, %c0_0] : memref<1x1284xf32, #tpu.memory_space<vmem>>, vector<1x640xf32>
    %c0_1 = arith.constant 0 : index
    %c640 = arith.constant 640 : index
    %1 = vector.load %arg8[%c0_1, %c640] : memref<1x1284xf32, #tpu.memory_space<vmem>>, vector<1x384xf32>
    %c0_2 = arith.constant 0 : index
    %c1024 = arith.constant 1024 : index
    %2 = vector.load %arg8[%c0_2, %c1024] : memref<1x1284xf32, #tpu.memory_space<vmem>>, vector<1x256xf32>
    %c0_3 = arith.constant 0 : index
    %c1280 = arith.constant 1280 : index
    %3 = vector.load %arg8[%c0_3, %c1280] : memref<1x1284xf32, #tpu.memory_space<vmem>>, vector<1x4xf32>
    %c0_4 = arith.constant 0 : index
    %c0_5 = arith.constant 0 : index
    %4 = vector.load %arg2[%c0_4, %c0_5] : memref<8x256xf32, #tpu.memory_space<vmem>>, vector<8x256xf32>
    %5 = arith.truncf %4 : vector<8x256xf32> to vector<8x256xbf16>
    %c0_6 = arith.constant 0 : index
    %c0_7 = arith.constant 0 : index
    %6 = vector.load %arg3[%c0_6, %c0_7] : memref<256x640xbf16, #tpu.memory_space<vmem>>, vector<256x640xbf16>
    %cst = arith.constant dense<0.000000e+00> : vector<8x640xf32>
    %7 = tpu.matmul %5, %6, %cst {dimension_numbers = #tpu.dot_dimension_numbers<[1], [0], [0], [1], [0, 0, 1, 1], [], []>} : vector<8x256xbf16>, vector<256x640xbf16>, vector<8x640xf32> -> vector<8x640xf32>
    %8 = vector.broadcast %0 : vector<1x640xf32> to vector<8x640xf32>
    %9 = arith.addf %7, %8 : vector<8x640xf32>
    %cst_8 = arith.constant 0.000000e+00 : f32
    %10 = vector.broadcast %cst_8 : f32 to vector<8x640xf32>
    %11 = arith.maximumf %9, %10 : vector<8x640xf32>
    %12 = arith.truncf %11 : vector<8x640xf32> to vector<8x640xbf16>
    %c0_9 = arith.constant 0 : index
    %c0_10 = arith.constant 0 : index
    %13 = vector.load %arg4[%c0_9, %c0_10] : memref<640x384xbf16, #tpu.memory_space<vmem>>, vector<640x384xbf16>
    %cst_11 = arith.constant dense<0.000000e+00> : vector<8x384xf32>
    %14 = tpu.matmul %12, %13, %cst_11 {dimension_numbers = #tpu.dot_dimension_numbers<[1], [0], [0], [1], [0, 0, 1, 1], [], []>} : vector<8x640xbf16>, vector<640x384xbf16>, vector<8x384xf32> -> vector<8x384xf32>
    %15 = vector.broadcast %1 : vector<1x384xf32> to vector<8x384xf32>
    %16 = arith.addf %14, %15 : vector<8x384xf32>
    %cst_12 = arith.constant 0.000000e+00 : f32
    %17 = vector.broadcast %cst_12 : f32 to vector<8x384xf32>
    %18 = arith.maximumf %16, %17 : vector<8x384xf32>
    %c0_13 = arith.constant 0 : index
    %c0_14 = arith.constant 0 : index
    %19 = vector.load %arg1[%c0_13, %c0_14] : memref<8x8xf32, #tpu.memory_space<vmem>>, vector<8x8xf32>
    %20 = arith.truncf %19 : vector<8x8xf32> to vector<8x8xbf16>
    %c0_15 = arith.constant 0 : index
    %c0_16 = arith.constant 0 : index
    %21 = vector.load %arg5[%c0_15, %c0_16] : memref<8x256xbf16, #tpu.memory_space<vmem>>, vector<8x256xbf16>
    %cst_17 = arith.constant dense<0.000000e+00> : vector<8x256xf32>
    %22 = tpu.matmul %20, %21, %cst_17 {dimension_numbers = #tpu.dot_dimension_numbers<[1], [0], [0], [1], [0, 0, 1, 1], [], []>} : vector<8x8xbf16>, vector<8x256xbf16>, vector<8x256xf32> -> vector<8x256xf32>
    %23 = arith.truncf %18 : vector<8x384xf32> to vector<8x384xbf16>
    %c0_18 = arith.constant 0 : index
    %c0_19 = arith.constant 0 : index
    %24 = vector.load %arg6[%c0_18, %c0_19] : memref<384x256xbf16, #tpu.memory_space<vmem>>, vector<384x256xbf16>
    %cst_20 = arith.constant dense<0.000000e+00> : vector<8x256xf32>
    %25 = tpu.matmul %23, %24, %cst_20 {dimension_numbers = #tpu.dot_dimension_numbers<[1], [0], [0], [1], [0, 0, 1, 1], [], []>} : vector<8x384xbf16>, vector<384x256xbf16>, vector<8x256xf32> -> vector<8x256xf32>
    %26 = arith.addf %22, %25 : vector<8x256xf32>
    %27 = vector.broadcast %2 : vector<1x256xf32> to vector<8x256xf32>
    %28 = arith.addf %26, %27 : vector<8x256xf32>
    %cst_21 = arith.constant 0.000000e+00 : f32
    %29 = vector.broadcast %cst_21 : f32 to vector<8x256xf32>
    %30 = arith.maximumf %28, %29 : vector<8x256xf32>
    %31 = arith.truncf %30 : vector<8x256xf32> to vector<8x256xbf16>
    %c0_22 = arith.constant 0 : index
    %c0_23 = arith.constant 0 : index
    %32 = vector.load %arg7[%c0_22, %c0_23] : memref<256x4xbf16, #tpu.memory_space<vmem>>, vector<256x4xbf16>
    %cst_24 = arith.constant dense<0.000000e+00> : vector<8x4xf32>
    %33 = tpu.matmul %31, %32, %cst_24 {dimension_numbers = #tpu.dot_dimension_numbers<[1], [0], [0], [1], [0, 0, 1, 1], [], []>} : vector<8x256xbf16>, vector<256x4xbf16>, vector<8x4xf32> -> vector<8x4xf32>
    %34 = vector.broadcast %3 : vector<1x4xf32> to vector<8x4xf32>
    %35 = arith.addf %33, %34 : vector<8x4xf32>
    %c0_25 = arith.constant 0 : index
    %c0_26 = arith.constant 0 : index
    %36 = vector.load %arg9[%c0_25, %c0_26] : memref<8x4xf32, #tpu.memory_space<vmem>>, vector<8x4xf32>
    tpu.vector_store %arg9[%c0_25, %c0_26], %35 {strides = array<i32>} : memref<8x4xf32, #tpu.memory_space<vmem>>, vector<8x4xf32>,
    return
  }
  func.func @transform_0(%arg0: i32) -> (i32, i32) {
    %c0_i32 = arith.constant 0 : i32
    %c0_i32_0 = arith.constant 0 : i32
    return %arg0, %c0_i32 : i32, i32
  }
  func.func @transform_1(%arg0: i32) -> (i32, i32) {
    %c0_i32 = arith.constant 0 : i32
    %c0_i32_0 = arith.constant 0 : i32
    return %arg0, %c0_i32 : i32, i32
  }
  func.func @transform_2(%arg0: i32) -> (i32, i32) {
    %c0_i32 = arith.constant 0 : i32
    %c0_i32_0 = arith.constant 0 : i32
    %c0_i32_1 = arith.constant 0 : i32
    return %c0_i32, %c0_i32_0 : i32, i32
  }
  func.func @transform_3(%arg0: i32) -> (i32, i32) {
    %c0_i32 = arith.constant 0 : i32
    %c0_i32_0 = arith.constant 0 : i32
    %c0_i32_1 = arith.constant 0 : i32
    return %c0_i32, %c0_i32_0 : i32, i32
  }
  func.func @transform_4(%arg0: i32) -> (i32, i32) {
    %c0_i32 = arith.constant 0 : i32
    %c0_i32_0 = arith.constant 0 : i32
    %c0_i32_1 = arith.constant 0 : i32
    return %c0_i32, %c0_i32_0 : i32, i32
  }
  func.func @transform_5(%arg0: i32) -> (i32, i32) {
    %c0_i32 = arith.constant 0 : i32
    %c0_i32_0 = arith.constant 0 : i32
    %c0_i32_1 = arith.constant 0 : i32
    return %c0_i32, %c0_i32_0 : i32, i32
  }
  func.func @transform_6(%arg0: i32) -> (i32, i32) {
    %c0_i32 = arith.constant 0 : i32
    %c0_i32_0 = arith.constant 0 : i32
    %c0_i32_1 = arith.constant 0 : i32
    return %c0_i32, %c0_i32_0 : i32, i32
  }
  func.func @transform_7(%arg0: i32) -> (i32, i32) {
    %c0_i32 = arith.constant 0 : i32
    %c0_i32_0 = arith.constant 0 : i32
    %c0_i32_1 = arith.constant 0 : i32
    return %c0_i32, %c0_i32_0 : i32, i32
  }
  func.func @transform_8(%arg0: i32) -> (i32, i32) {
    %c0_i32 = arith.constant 0 : i32
    %c0_i32_0 = arith.constant 0 : i32
    return %arg0, %c0_i32 : i32, i32
  }
}

</mosaic_0001>

<llo_original>
// kernel: pi_vision_forward.1
$region0: #{pi_vision_forward.1}
  #allocation0 [shape = 'u32[]', space=smem, size = 0x4, offset = 0x4, fixed_abs, tag = 'smem constant byte address 0x4 - core index']
  #allocation1 [shape = 'u32[144,128]{1,0:T(1,128)}', space=vmem, size = 0x12000, scoped, tag = 'internal scratch']
  %s0 = inlined_call_operand.vmem [shape: f32[8,8], index: 0, kind: input, shape index: {}]
  %s1 = inlined_call_operand.vmem [shape: f32[8,256], index: 1, kind: input, shape index: {}]
  %s2 = inlined_call_operand.hbm [shape: bf16[256,640], index: 2, kind: input, shape index: {}]
  %s3 = inlined_call_operand.hbm [shape: bf16[640,384], index: 3, kind: input, shape index: {}]
  %s4 = inlined_call_operand.vmem [shape: bf16[8,256], index: 4, kind: input, shape index: {}]
  %s5 = inlined_call_operand.hbm [shape: bf16[384,256], index: 5, kind: input, shape index: {}]
  %s6 = inlined_call_operand.vmem [shape: bf16[256,4], index: 6, kind: input, shape index: {}]
  %s7 = inlined_call_operand.vmem [shape: f32[1,1284], index: 7, kind: input, shape index: {}]
  %s8 = inlined_call_operand.vmem [shape: f32[8,4], index: 8, kind: output, shape index: {}]
  %s9 = sld [smem:[#allocation0]]
  $region54: #{pi_vision_forward.1} parent=0
    _
  %s11 = ssub.s32 1, %s9
  %s12 = scalar_select 0, %s11, %s9
  $region1: #{pi_vision_forward.1} parent=0
    #allocation2 [shape = 'u8[327680]{0}', space=vmem, size = 0x50000, scoped, tag = 'input window, operand 2, single buffered']
    #allocation3 [shape = 's32[1]{0}', space=sflag, size = 0x4, scoped, tag = 'scoped memory for pi_vision_forward.1']
    #allocation4 [shape = 'u8[491520]{0}', space=vmem, size = 0x78000, scoped, tag = 'input window, operand 3, single buffered']
    #allocation5 [shape = 's32[1]{0}', space=sflag, size = 0x4, scoped, tag = 'scoped memory for pi_vision_forward.1']
    #allocation6 [shape = 'u8[196608]{0}', space=vmem, size = 0x30000, scoped, tag = 'input window, operand 5, single buffered']
    %13 = vsyncpa [#allocation3], 0
    %14 = vsyncpa [#allocation5], 0
    // Predicated region
    $region2: #{pi_vision_forward.1} parent=1 // pred_check
      _
    $region3: #{pi_vision_forward.1} parent=1 // pred_check_branch
      %16 = sbr.rel (0) target = $region5
    $region4: #{pi_vision_forward.1} parent=1 // pred_region
      _
    $region5: #{pi_vision_forward.1} parent=1 // pred_fallthru
      _
    // Predicated region
    $region6: #{pi_vision_forward.1} parent=1 // pred_check
      _
    $region7: #{pi_vision_forward.1} parent=1 // pred_check_branch
      %18 = sbr.rel (0) target = $region9
    $region8: #{pi_vision_forward.1} parent=1 // pred_region
      _
    $region9: #{pi_vision_forward.1} parent=1 // pred_fallthru
      _
    // Predicated region
    $region10: #{pi_vision_forward.1} parent=1 // pred_check
      _
    $region11: #{pi_vision_forward.1} parent=1 // pred_check_branch
      %20 = sbr.rel (0) target = $region13
    $region12: #{pi_vision_forward.1} parent=1 // pred_region
      %s22 = ssub.s32 10240, 10240
      %23 = vsyncadd [#allocation3], %s22
      %s24 = sshll.u32 [#allocation2], 4
      %s25 = int_to_ptr.vmem [resolvable:$true] %s24
      %30 = dma.hbm_to_vmem [thread:$0]  %s2, 10240, %s25, [#allocation3], 320, 320, 20
    $region13: #{pi_vision_forward.1} parent=1 // pred_fallthru
      _
    // Predicated region
    $region14: #{pi_vision_forward.1} parent=1 // pred_check
      _
    $region15: #{pi_vision_forward.1} parent=1 // pred_check_branch
      %32 = sbr.rel (0) target = $region17
    $region16: #{pi_vision_forward.1} parent=1 // pred_region
      %s34 = ssub.s32 15360, 15360
      %35 = vsyncadd [#allocation5], %s34
      %s36 = sshll.u32 [#allocation4], 4
      %s37 = int_to_ptr.vmem [resolvable:$true] %s36
      %42 = dma.hbm_to_vmem [thread:$0]  %s3, 15360, %s37, [#allocation5], 192, 192, 12
    $region17: #{pi_vision_forward.1} parent=1 // pred_fallthru
      _
    // Predicated region
    $region18: #{pi_vision_forward.1} parent=1 // pred_check
      _
    $region19: #{pi_vision_forward.1} parent=1 // pred_check_branch
      %44 = sbr.rel (0) target = $region21
    $region20: #{pi_vision_forward.1} parent=1 // pred_region
      _
    $region21: #{pi_vision_forward.1} parent=1 // pred_fallthru
      _
    // Predicated region
    $region22: #{pi_vision_forward.1} parent=1 // pred_check
      _
    $region23: #{pi_vision_forward.1} parent=1 // pred_check_branch
      %46 = sbr.rel (0) target = $region25
    $region24: #{pi_vision_forward.1} parent=1 // pred_region
      %s48 = ssub.s32 6144, 6144
      %49 = vsyncadd [#allocation5], %s48
      %s50 = sshll.u32 [#allocation6], 4
      %s51 = int_to_ptr.vmem [resolvable:$true] %s50
      %56 = dma.hbm_to_vmem [thread:$0]  %s5, 6144, %s51, [#allocation5], 128, 128, 8
    $region25: #{pi_vision_forward.1} parent=1 // pred_fallthru
      _
    // Predicated region
    $region26: #{pi_vision_forward.1} parent=1 // pred_check
      _
    $region27: #{pi_vision_forward.1} parent=1 // pred_check_branch
      %58 = sbr.rel (0) target = $region29
    $region28: #{pi_vision_forward.1} parent=1 // pred_region
      _
    $region29: #{pi_vision_forward.1} parent=1 // pred_fallthru
      _
    // Predicated region
    $region30: #{pi_vision_forward.1} parent=1 // pred_check
      _
    $region31: #{pi_vision_forward.1} parent=1 // pred_check_branch
      %60 = sbr.rel (0) target = $region33
    $region32: #{pi_vision_forward.1} parent=1 // pred_region
      _
    $region33: #{pi_vision_forward.1} parent=1 // pred_fallthru
      _
    // Predicated region
    $region34: #{pi_vision_forward.1} parent=1 // pred_check
      _
    $region35: #{pi_vision_forward.1} parent=1 // pred_check_branch
      %62 = sbr.rel (0) target = $region37
    $region36: #{pi_vision_forward.1} parent=1 // pred_region
      %63 = dma.done [#allocation3], 10240
    $region37: #{pi_vision_forward.1} parent=1 // pred_fallthru
      _
    // Predicated region
    $region38: #{pi_vision_forward.1} parent=1 // pred_check
      _
    $region39: #{pi_vision_forward.1} parent=1 // pred_check_branch
      %65 = sbr.rel (0) target = $region41
    $region40: #{pi_vision_forward.1} parent=1 // pred_region
      %66 = dma.done [#allocation5], 15360
    $region41: #{pi_vision_forward.1} parent=1 // pred_fallthru
      _
    // Predicated region
    $region42: #{pi_vision_forward.1} parent=1 // pred_check
      _
    $region43: #{pi_vision_forward.1} parent=1 // pred_check_branch
      %68 = sbr.rel (0) target = $region45
    $region44: #{pi_vision_forward.1} parent=1 // pred_region
      %69 = dma.done [#allocation5], 6144
    $region45: #{pi_vision_forward.1} parent=1 // pred_fallthru
      _
    %v71 = vld [vmem:[%s7] sm:$0x1f]
    %v72 = vld [vmem:[%s7 + $0x5] sm:$0x7]
    %v73 = vld [vmem:[%s7 + $0x8] sm:$0x3]
    %v74 = vld [vmem:[%s7 + $0xa] sm:$0x1]
    %v75 = vld [vmem:[%s1] sm:$0xff]
    %v76 = vld [vmem:[%s1 + $0x8] sm:$0xff]
    %v77 = vpack.c.bf16 %v75, %v75
    %v78 = vpack.c.bf16 %v76, %v76
    %v79 = vld [vmem:[#allocation2] sm:$0xff]
    %v80 = vld [vmem:[#allocation2 + $0x8] sm:$0xff]
    %v81 = vld [vmem:[#allocation2 + $0x10] sm:$0xf]
    %v82 = vld [vmem:[#allocation2 + $0x14] sm:$0xff]
    %v83 = vld [vmem:[#allocation2 + $0x1c] sm:$0xff]
    %v84 = vld [vmem:[#allocation2 + $0x24] sm:$0xf]
    %v85 = vld [vmem:[#allocation2 + $0x28] sm:$0xff]
    %v86 = vld [vmem:[#allocation2 + $0x30] sm:$0xff]
    %v87 = vld [vmem:[#allocation2 + $0x38] sm:$0xf]
    %v88 = vld [vmem:[#allocation2 + $0x3c] sm:$0xff]
    %v89 = vld [vmem:[#allocation2 + $0x44] sm:$0xff]
    %v90 = vld [vmem:[#allocation2 + $0x4c] sm:$0xf]
    %v91 = vld [vmem:[#allocation2 + $0x50] sm:$0xff]
    %v92 = vld [vmem:[#allocation2 + $0x58] sm:$0xff]
    %v93 = vld [vmem:[#allocation2 + $0x60] sm:$0xf]
    %v94 = vld [vmem:[#allocation2 + $0x64] sm:$0xff]
    %v95 = vld [vmem:[#allocation2 + $0x6c] sm:$0xff]
    %v96 = vld [vmem:[#allocation2 + $0x74] sm:$0xf]
    %v97 = vld [vmem:[#allocation2 + $0x78] sm:$0xff]
    %v98 = vld [vmem:[#allocation2 + $0x80] sm:$0xff]
    %v99 = vld [vmem:[#allocation2 + $0x88] sm:$0xf]
    %v100 = vld [vmem:[#allocation2 + $0x8c] sm:$0xff]
    %v101 = vld [vmem:[#allocation2 + $0x94] sm:$0xff]
    %v102 = vld [vmem:[#allocation2 + $0x9c] sm:$0xf]
    %v103 = vld [vmem:[#allocation2 + $0xa0] sm:$0xff]
    %v104 = vld [vmem:[#allocation2 + $0xa8] sm:$0xff]
    %v105 = vld [vmem:[#allocation2 + $0xb0] sm:$0xf]
    %v106 = vld [vmem:[#allocation2 + $0xb4] sm:$0xff]
    %v107 = vld [vmem:[#allocation2 + $0xbc] sm:$0xff]
    %v108 = vld [vmem:[#allocation2 + $0xc4] sm:$0xf]
    %v109 = vld [vmem:[#allocation2 + $0xc8] sm:$0xff]
    %v110 = vld [vmem:[#allocation2 + $0xd0] sm:$0xff]
    %v111 = vld [vmem:[#allocation2 + $0xd8] sm:$0xf]
    %v112 = vld [vmem:[#allocation2 + $0xdc] sm:$0xff]
    %v113 = vld [vmem:[#allocation2 + $0xe4] sm:$0xff]
    %v114 = vld [vmem:[#allocation2 + $0xec] sm:$0xf]
    %v115 = vld [vmem:[#allocation2 + $0xf0] sm:$0xff]
    %v116 = vld [vmem:[#allocation2 + $0xf8] sm:$0xff]
    %v117 = vld [vmem:[#allocation2 + $0x100] sm:$0xf]
    %v118 = vld [vmem:[#allocation2 + $0x104] sm:$0xff]
    %v119 = vld [vmem:[#allocation2 + $0x10c] sm:$0xff]
    %v120 = vld [vmem:[#allocation2 + $0x114] sm:$0xf]
    %v121 = vld [vmem:[#allocation2 + $0x118] sm:$0xff]
    %v122 = vld [vmem:[#allocation2 + $0x120] sm:$0xff]
    %v123 = vld [vmem:[#allocation2 + $0x128] sm:$0xf]
    %v124 = vld [vmem:[#allocation2 + $0x12c] sm:$0xff]
    %v125 = vld [vmem:[#allocation2 + $0x134] sm:$0xff]
    %v126 = vld [vmem:[#allocation2 + $0x13c] sm:$0xf]
    %v127 = vld [vmem:[#allocation2 + $0x140] sm:$0xff]
    %v128 = vld [vmem:[#allocation2 + $0x148] sm:$0xff]
    %v129 = vld [vmem:[#allocation2 + $0x150] sm:$0xf]
    %v130 = vld [vmem:[#allocation2 + $0x154] sm:$0xff]
    %v131 = vld [vmem:[#allocation2 + $0x15c] sm:$0xff]
    %v132 = vld [vmem:[#allocation2 + $0x164] sm:$0xf]
    %v133 = vld [vmem:[#allocation2 + $0x168] sm:$0xff]
    %v134 = vld [vmem:[#allocation2 + $0x170] sm:$0xff]
    %v135 = vld [vmem:[#allocation2 + $0x178] sm:$0xf]
    %v136 = vld [vmem:[#allocation2 + $0x17c] sm:$0xff]
    %v137 = vld [vmem:[#allocation2 + $0x184] sm:$0xff]
    %v138 = vld [vmem:[#allocation2 + $0x18c] sm:$0xf]
    %v139 = vld [vmem:[#allocation2 + $0x190] sm:$0xff]
    %v140 = vld [vmem:[#allocation2 + $0x198] sm:$0xff]
    %v141 = vld [vmem:[#allocation2 + $0x1a0] sm:$0xf]
    %v142 = vld [vmem:[#allocation2 + $0x1a4] sm:$0xff]
    %v143 = vld [vmem:[#allocation2 + $0x1ac] sm:$0xff]
    %v144 = vld [vmem:[#allocation2 + $0x1b4] sm:$0xf]
    %v145 = vld [vmem:[#allocation2 + $0x1b8] sm:$0xff]
    %v146 = vld [vmem:[#allocation2 + $0x1c0] sm:$0xff]
    %v147 = vld [vmem:[#allocation2 + $0x1c8] sm:$0xf]
    %v148 = vld [vmem:[#allocation2 + $0x1cc] sm:$0xff]
    %v149 = vld [vmem:[#allocation2 + $0x1d4] sm:$0xff]
    %v150 = vld [vmem:[#allocation2 + $0x1dc] sm:$0xf]
    %v151 = vld [vmem:[#allocation2 + $0x1e0] sm:$0xff]
    %v152 = vld [vmem:[#allocation2 + $0x1e8] sm:$0xff]
    %v153 = vld [vmem:[#allocation2 + $0x1f0] sm:$0xf]
    %v154 = vld [vmem:[#allocation2 + $0x1f4] sm:$0xff]
    %v155 = vld [vmem:[#allocation2 + $0x1fc] sm:$0xff]
    %v156 = vld [vmem:[#allocation2 + $0x204] sm:$0xf]
    %v157 = vld [vmem:[#allocation2 + $0x208] sm:$0xff]
    %v158 = vld [vmem:[#allocation2 + $0x210] sm:$0xff]
    %v159 = vld [vmem:[#allocation2 + $0x218] sm:$0xf]
    %v160 = vld [vmem:[#allocation2 + $0x21c] sm:$0xff]
    %v161 = vld [vmem:[#allocation2 + $0x224] sm:$0xff]
    %v162 = vld [vmem:[#allocation2 + $0x22c] sm:$0xf]
    %v163 = vld [vmem:[#allocation2 + $0x230] sm:$0xff]
    %v164 = vld [vmem:[#allocation2 + $0x238] sm:$0xff]
    %v165 = vld [vmem:[#allocation2 + $0x240] sm:$0xf]
    %v166 = vld [vmem:[#allocation2 + $0x244] sm:$0xff]
    %v167 = vld [vmem:[#allocation2 + $0x24c] sm:$0xff]
    %v168 = vld [vmem:[#allocation2 + $0x254] sm:$0xf]
    %v169 = vld [vmem:[#allocation2 + $0x258] sm:$0xff]
    %v170 = vld [vmem:[#allocation2 + $0x260] sm:$0xff]
    %v171 = vld [vmem:[#allocation2 + $0x268] sm:$0xf]
    %v172 = vld [vmem:[#allocation2 + $0x26c] sm:$0xff]
    %v173 = vld [vmem:[#allocation2 + $0x274] sm:$0xff]
    %v174 = vld [vmem:[#allocation2 + $0x27c] sm:$0xf]
    %v176 = vlaneseq
    %v177 = vshrl.u32 %v176, 7
    %v178 = vsub.s32 0, %v177
    %v179 = vrot.slane %v71, %v178
    %v180 = vlaneseq
    %v181 = vshrl.u32 %v180, 7
    %v182 = vsub.s32 1, %v181
    %v183 = vrot.slane %v71, %v182
    %v184 = vlaneseq
    %v185 = vshrl.u32 %v184, 7
    %v186 = vsub.s32 2, %v185
    %v187 = vrot.slane %v71, %v186
    %v188 = vlaneseq
    %v189 = vshrl.u32 %v188, 7
    %v190 = vsub.s32 3, %v189
    %v191 = vrot.slane %v71, %v190
    %v192 = vlaneseq
    %v193 = vshrl.u32 %v192, 7
    %v194 = vsub.s32 4, %v193
    %v195 = vrot.slane %v71, %v194
    %v297 = vunpack.c.l.b16 %v79
    %v298 = vunpack.c.h.b16 %v79
    %v299 = vunpack.c.l.b16 %v80
    %v300 = vunpack.c.h.b16 %v80
    %v301 = vunpack.c.l.b16 %v81
    %v302 = vunpack.c.l.b16 %v82
    %v303 = vunpack.c.h.b16 %v82
    %v304 = vunpack.c.l.b16 %v83
    %v305 = vunpack.c.h.b16 %v83
    %v306 = vunpack.c.l.b16 %v84
    %v307 = vunpack.c.l.b16 %v85
    %v308 = vunpack.c.h.b16 %v85
    %v309 = vunpack.c.l.b16 %v86
    %v310 = vunpack.c.h.b16 %v86
    %v311 = vunpack.c.l.b16 %v87
    %v312 = vunpack.c.l.b16 %v88
    %v313 = vunpack.c.h.b16 %v88
    %v314 = vunpack.c.l.b16 %v89
    %v315 = vunpack.c.h.b16 %v89
    %v316 = vunpack.c.l.b16 %v90
    %v317 = vunpack.c.l.b16 %v91
    %v318 = vunpack.c.h.b16 %v91
    %v319 = vunpack.c.l.b16 %v92
    %v320 = vunpack.c.h.b16 %v92
    %v321 = vunpack.c.l.b16 %v93
    %v322 = vunpack.c.l.b16 %v94
    %v323 = vunpack.c.h.b16 %v94
    %v324 = vunpack.c.l.b16 %v95
    %v325 = vunpack.c.h.b16 %v95
    %v326 = vunpack.c.l.b16 %v96
    %v327 = vunpack.c.l.b16 %v97
    %v328 = vunpack.c.h.b16 %v97
    %v329 = vunpack.c.l.b16 %v98
    %v330 = vunpack.c.h.b16 %v98
    %v331 = vunpack.c.l.b16 %v99
    %v332 = vunpack.c.l.b16 %v100
    %v333 = vunpack.c.h.b16 %v100
    %v334 = vunpack.c.l.b16 %v101
    %v335 = vunpack.c.h.b16 %v101
    %v336 = vunpack.c.l.b16 %v102
    %v337 = vunpack.c.l.b16 %v103
    %v338 = vunpack.c.h.b16 %v103
    %v339 = vunpack.c.l.b16 %v104
    %v340 = vunpack.c.h.b16 %v104
    %v341 = vunpack.c.l.b16 %v105
    %v342 = vunpack.c.l.b16 %v106
    %v343 = vunpack.c.h.b16 %v106
    %v344 = vunpack.c.l.b16 %v107
    %v345 = vunpack.c.h.b16 %v107
    %v346 = vunpack.c.l.b16 %v108
    %v347 = vunpack.c.l.b16 %v109
    %v348 = vunpack.c.h.b16 %v109
    %v349 = vunpack.c.l.b16 %v110
    %v350 = vunpack.c.h.b16 %v110
    %v351 = vunpack.c.l.b16 %v111
    %v352 = vunpack.c.l.b16 %v112
    %v353 = vunpack.c.h.b16 %v112
    %v354 = vunpack.c.l.b16 %v113
    %v355 = vunpack.c.h.b16 %v113
    %v356 = vunpack.c.l.b16 %v114
    %v357 = vunpack.c.l.b16 %v115
    %v358 = vunpack.c.h.b16 %v115
    %v359 = vunpack.c.l.b16 %v116
    %v360 = vunpack.c.h.b16 %v116
    %v361 = vunpack.c.l.b16 %v117
    %v362 = vunpack.c.l.b16 %v118
    %v363 = vunpack.c.h.b16 %v118
    %v364 = vunpack.c.l.b16 %v119
    %v365 = vunpack.c.h.b16 %v119
    %v366 = vunpack.c.l.b16 %v120
    %v367 = vunpack.c.l.b16 %v121
    %v368 = vunpack.c.h.b16 %v121
    %v369 = vunpack.c.l.b16 %v122
    %v370 = vunpack.c.h.b16 %v122
    %v371 = vunpack.c.l.b16 %v123
    %v372 = vunpack.c.l.b16 %v124
    %v373 = vunpack.c.h.b16 %v124
    %v374 = vunpack.c.l.b16 %v125
    %v375 = vunpack.c.h.b16 %v125
    %v376 = vunpack.c.l.b16 %v126
    %v377 = vunpack.c.l.b16 %v127
    %v378 = vunpack.c.h.b16 %v127
    %v379 = vunpack.c.l.b16 %v128
    %v380 = vunpack.c.h.b16 %v128
    %v381 = vunpack.c.l.b16 %v129
    %v382 = vunpack.c.l.b16 %v130
    %v383 = vunpack.c.h.b16 %v130
    %v384 = vunpack.c.l.b16 %v131
    %v385 = vunpack.c.h.b16 %v131
    %v386 = vunpack.c.l.b16 %v132
    %v387 = vunpack.c.l.b16 %v133
    %v388 = vunpack.c.h.b16 %v133
    %v389 = vunpack.c.l.b16 %v134
    %v390 = vunpack.c.h.b16 %v134
    %v391 = vunpack.c.l.b16 %v135
    %v392 = vunpack.c.l.b16 %v136
    %v393 = vunpack.c.h.b16 %v136
    %v394 = vunpack.c.l.b16 %v137
    %v395 = vunpack.c.h.b16 %v137
    %v396 = vunpack.c.l.b16 %v138
    %v397 = vunpack.c.l.b16 %v139
    %v398 = vunpack.c.h.b16 %v139
    %v399 = vunpack.c.l.b16 %v140
    %v400 = vunpack.c.h.b16 %v140
    %v401 = vunpack.c.l.b16 %v141
    %v402 = vunpack.c.l.b16 %v142
    %v403 = vunpack.c.h.b16 %v142
    %v404 = vunpack.c.l.b16 %v143
    %v405 = vunpack.c.h.b16 %v143
    %v406 = vunpack.c.l.b16 %v144
    %v407 = vunpack.c.l.b16 %v145
    %v408 = vunpack.c.h.b16 %v145
    %v409 = vunpack.c.l.b16 %v146
    %v410 = vunpack.c.h.b16 %v146
    %v411 = vunpack.c.l.b16 %v147
    %v412 = vunpack.c.l.b16 %v148
    %v413 = vunpack.c.h.b16 %v148
    %v414 = vunpack.c.l.b16 %v149
    %v415 = vunpack.c.h.b16 %v149
    %v416 = vunpack.c.l.b16 %v150
    %v417 = vunpack.c.l.b16 %v151
    %v418 = vunpack.c.h.b16 %v151
    %v419 = vunpack.c.l.b16 %v152
    %v420 = vunpack.c.h.b16 %v152
    %v421 = vunpack.c.l.b16 %v153
    %v422 = vunpack.c.l.b16 %v154
    %v423 = vunpack.c.h.b16 %v154
    %v424 = vunpack.c.l.b16 %v155
    %v425 = vunpack.c.h.b16 %v155
    %v426 = vunpack.c.l.b16 %v156
    %v427 = vunpack.c.l.b16 %v157
    %v428 = vunpack.c.h.b16 %v157
    %v429 = vunpack.c.l.b16 %v158
    %v430 = vunpack.c.h.b16 %v158
    %v431 = vunpack.c.l.b16 %v159
    %v432 = vunpack.c.l.b16 %v160
    %v433 = vunpack.c.h.b16 %v160
    %v434 = vunpack.c.l.b16 %v161
    %v435 = vunpack.c.h.b16 %v161
    %v436 = vunpack.c.l.b16 %v162
    %v437 = vunpack.c.l.b16 %v163
    %v438 = vunpack.c.h.b16 %v163
    %v439 = vunpack.c.l.b16 %v164
    %v440 = vunpack.c.h.b16 %v164
    %v441 = vunpack.c.l.b16 %v165
    %v442 = vunpack.c.l.b16 %v166
    %v443 = vunpack.c.h.b16 %v166
    %v444 = vunpack.c.l.b16 %v167
    %v445 = vunpack.c.h.b16 %v167
    %v446 = vunpack.c.l.b16 %v168
    %v447 = vunpack.c.l.b16 %v169
    %v448 = vunpack.c.h.b16 %v169
    %v449 = vunpack.c.l.b16 %v170
    %v450 = vunpack.c.h.b16 %v170
    %v451 = vunpack.c.l.b16 %v171
    %v452 = vunpack.c.l.b16 %v172
    %v453 = vunpack.c.h.b16 %v172
    %v454 = vunpack.c.l.b16 %v173
    %v455 = vunpack.c.h.b16 %v173
    %v456 = vunpack.c.l.b16 %v174
    %v457 = vpack.c.b16 %v302, %v297
    %v458 = vpack.c.b16 %v303, %v298
    %v459 = vpack.c.b16 %v304, %v299
    %v460 = vpack.c.b16 %v305, %v300
    %v461 = vpack.c.b16 %v306, %v301
    %v462 = vpack.c.b16 %v312, %v307
    %v463 = vpack.c.b16 %v313, %v308
    %v464 = vpack.c.b16 %v314, %v309
    %v465 = vpack.c.b16 %v315, %v310
    %v466 = vpack.c.b16 %v316, %v311
    %v467 = vpack.c.b16 %v322, %v317
    %v468 = vpack.c.b16 %v323, %v318
    %v469 = vpack.c.b16 %v324, %v319
    %v470 = vpack.c.b16 %v325, %v320
    %v471 = vpack.c.b16 %v326, %v321
    %v472 = vpack.c.b16 %v332, %v327
    %v473 = vpack.c.b16 %v333, %v328
    %v474 = vpack.c.b16 %v334, %v329
    %v475 = vpack.c.b16 %v335, %v330
    %v476 = vpack.c.b16 %v336, %v331
    %v477 = vpack.c.b16 %v342, %v337
    %v478 = vpack.c.b16 %v343, %v338
    %v479 = vpack.c.b16 %v344, %v339
    %v480 = vpack.c.b16 %v345, %v340
    %v481 = vpack.c.b16 %v346, %v341
    %v482 = vpack.c.b16 %v352, %v347
    %v483 = vpack.c.b16 %v353, %v348
    %v484 = vpack.c.b16 %v354, %v349
    %v485 = vpack.c.b16 %v355, %v350
    %v486 = vpack.c.b16 %v356, %v351
    %v487 = vpack.c.b16 %v362, %v357
    %v488 = vpack.c.b16 %v363, %v358
    %v489 = vpack.c.b16 %v364, %v359
    %v490 = vpack.c.b16 %v365, %v360
    %v491 = vpack.c.b16 %v366, %v361
    %v492 = vpack.c.b16 %v372, %v367
    %v493 = vpack.c.b16 %v373, %v368
    %v494 = vpack.c.b16 %v374, %v369
    %v495 = vpack.c.b16 %v375, %v370
    %v496 = vpack.c.b16 %v376, %v371
    %v497 = vpack.c.b16 %v382, %v377
    %v498 = vpack.c.b16 %v383, %v378
    %v499 = vpack.c.b16 %v384, %v379
    %v500 = vpack.c.b16 %v385, %v380
    %v501 = vpack.c.b16 %v386, %v381
    %v502 = vpack.c.b16 %v392, %v387
    %v503 = vpack.c.b16 %v393, %v388
    %v504 = vpack.c.b16 %v394, %v389
    %v505 = vpack.c.b16 %v395, %v390
    %v506 = vpack.c.b16 %v396, %v391
    %v507 = vpack.c.b16 %v402, %v397
    %v508 = vpack.c.b16 %v403, %v398
    %v509 = vpack.c.b16 %v404, %v399
    %v510 = vpack.c.b16 %v405, %v400
    %v511 = vpack.c.b16 %v406, %v401
    %v512 = vpack.c.b16 %v412, %v407
    %v513 = vpack.c.b16 %v413, %v408
    %v514 = vpack.c.b16 %v414, %v409
    %v515 = vpack.c.b16 %v415, %v410
    %v516 = vpack.c.b16 %v416, %v411
    %v517 = vpack.c.b16 %v422, %v417
    %v518 = vpack.c.b16 %v423, %v418
    %v519 = vpack.c.b16 %v424, %v419
    %v520 = vpack.c.b16 %v425, %v420
    %v521 = vpack.c.b16 %v426, %v421
    %v522 = vpack.c.b16 %v432, %v427
    %v523 = vpack.c.b16 %v433, %v428
    %v524 = vpack.c.b16 %v434, %v429
    %v525 = vpack.c.b16 %v435, %v430
    %v526 = vpack.c.b16 %v436, %v431
    %v527 = vpack.c.b16 %v442, %v437
    %v528 = vpack.c.b16 %v443, %v438
    %v529 = vpack.c.b16 %v444, %v439
    %v530 = vpack.c.b16 %v445, %v440
    %v531 = vpack.c.b16 %v446, %v441
    %v532 = vpack.c.b16 %v452, %v447
    %v533 = vpack.c.b16 %v453, %v448
    %v534 = vpack.c.b16 %v454, %v449
    %v535 = vpack.c.b16 %v455, %v450
    %v536 = vpack.c.b16 %v456, %v451
    %617 = vmatprep.subr.bf16.mxu0 %v458
    %618 = vmatpush1.bf16.msra.mxu0 %v457
    %619 = vmatprep.subr.bf16.mxu0 %v463
    %620 = vmatpush1.bf16.msra.mxu0 %v462
    %621 = vmatprep.subr.bf16.mxu0 %v468
    %622 = vmatpush1.bf16.msra.mxu0 %v467
    %623 = vmatprep.subr.bf16.mxu0 %v473
    %624 = vmatpush1.bf16.msra.mxu0 %v472
    %625 = vmatprep.subr.bf16.mxu0 %v478
    %626 = vmatpush1.bf16.msra.mxu0 %v477
    %627 = vmatprep.subr.bf16.mxu0 %v483
    %628 = vmatpush1.bf16.msra.mxu0 %v482
    %629 = vmatprep.subr.bf16.mxu0 %v488
    %630 = vmatpush1.bf16.msra.mxu0 %v487
    %631 = vmatprep.subr.bf16.mxu0 %v493
    %632 = vmatpush1.bf16.msra.mxu0 %v492
    %633 = vmatprep.subr.bf16.mxu0 %v498
    %634 = vmatpush1.bf16.msra.mxu0 %v497
    %635 = vmatprep.subr.bf16.mxu0 %v503
    %636 = vmatpush1.bf16.msra.mxu0 %v502
    %637 = vmatprep.subr.bf16.mxu0 %v508
    %638 = vmatpush1.bf16.msra.mxu0 %v507
    %639 = vmatprep.subr.bf16.mxu0 %v513
    %640 = vmatpush1.bf16.msra.mxu0 %v512
    %641 = vmatprep.subr.bf16.mxu0 %v518
    %642 = vmatpush1.bf16.msra.mxu0 %v517
    %643 = vmatprep.subr.bf16.mxu0 %v523
    %644 = vmatpush1.bf16.msra.mxu0 %v522
    %645 = vmatprep.subr.bf16.mxu0 %v528
    %646 = vmatpush1.bf16.msra.mxu0 %v527
    %647 = vmatprep.subr.bf16.mxu0 %v533
    %648 = vmatpush1.bf16.msra.mxu0 %v532
    %649 = vmatprep.mubr.bf16.mxu0 %v78
    %650 = vmatmul.mubr.bf16.gmra.mrb[0].mxu0 %v77
    %v651 = vpop.f32.mrb[0].mxu0
    %v652 = vadd.f32 %v179, %v651
    %v653 = vpop.f32.mrb[0].mxu0
    %v654 = vadd.f32 %v183, %v653
    %v655 = vpop.f32.mrb[0].mxu0
    %v656 = vpop.f32.mrb[0].mxu0
    %657 = vdwg.mxu0
    %658 = vmatprep.subr.bf16.mxu0 %v460
    %659 = vmatpush1.bf16.msra.mxu0 %v459
    %660 = vmatprep.subr.bf16.mxu0 %v465
    %661 = vmatpush1.bf16.msra.mxu0 %v464
    %662 = vmatprep.subr.bf16.mxu0 %v470
    %663 = vmatpush1.bf16.msra.mxu0 %v469
    %664 = vmatprep.subr.bf16.mxu0 %v475
    %665 = vmatpush1.bf16.msra.mxu0 %v474
    %666 = vmatprep.subr.bf16.mxu0 %v480
    %667 = vmatpush1.bf16.msra.mxu0 %v479
    %668 = vmatprep.subr.bf16.mxu0 %v485
    %669 = vmatpush1.bf16.msra.mxu0 %v484
    %670 = vmatprep.subr.bf16.mxu0 %v490
    %671 = vmatpush1.bf16.msra.mxu0 %v489
    %672 = vmatprep.subr.bf16.mxu0 %v495
    %673 = vmatpush1.bf16.msra.mxu0 %v494
    %674 = vmatprep.subr.bf16.mxu0 %v500
    %675 = vmatpush1.bf16.msra.mxu0 %v499
    %676 = vmatprep.subr.bf16.mxu0 %v505
    %677 = vmatpush1.bf16.msra.mxu0 %v504
    %678 = vmatprep.subr.bf16.mxu0 %v510
    %679 = vmatpush1.bf16.msra.mxu0 %v509
    %680 = vmatprep.subr.bf16.mxu0 %v515
    %681 = vmatpush1.bf16.msra.mxu0 %v514
    %682 = vmatprep.subr.bf16.mxu0 %v520
    %683 = vmatpush1.bf16.msra.mxu0 %v519
    %684 = vmatprep.subr.bf16.mxu0 %v525
    %685 = vmatpush1.bf16.msra.mxu0 %v524
    %686 = vmatprep.subr.bf16.mxu0 %v530
    %687 = vmatpush1.bf16.msra.mxu0 %v529
    %688 = vmatprep.subr.bf16.mxu0 %v535
    %689 = vmatpush1.bf16.msra.mxu0 %v534
    %690 = vmatprep.mubr.bf16.mxu0 %v78
    %691 = vmatmul.mubr.bf16.gmra.mrb[0].mxu0 %v77
    %v692 = vpop.f32.mrb[0].mxu0
    %v693 = vadd.f32 %v187, %v692
    %v694 = vpop.f32.mrb[0].mxu0
    %v695 = vadd.f32 %v191, %v694
    %v696 = vpop.f32.mrb[0].mxu0
    %v697 = vpop.f32.mrb[0].mxu0
    %698 = vdwg.mxu0
    %699 = vmatprep.subr.bf16.mxu0 0
    %700 = vmatpush1.bf16.msra.mxu0 %v461
    %701 = vmatprep.subr.bf16.mxu0 0
    %702 = vmatpush1.bf16.msra.mxu0 %v466
    %703 = vmatprep.subr.bf16.mxu0 0
    %704 = vmatpush1.bf16.msra.mxu0 %v471
    %705 = vmatprep.subr.bf16.mxu0 0
    %706 = vmatpush1.bf16.msra.mxu0 %v476
    %707 = vmatprep.subr.bf16.mxu0 0
    %708 = vmatpush1.bf16.msra.mxu0 %v481
    %709 = vmatprep.subr.bf16.mxu0 0
    %710 = vmatpush1.bf16.msra.mxu0 %v486
    %711 = vmatprep.subr.bf16.mxu0 0
    %712 = vmatpush1.bf16.msra.mxu0 %v491
    %713 = vmatprep.subr.bf16.mxu0 0
    %714 = vmatpush1.bf16.msra.mxu0 %v496
    %715 = vmatprep.subr.bf16.mxu0 0
    %716 = vmatpush1.bf16.msra.mxu0 %v501
    %717 = vmatprep.subr.bf16.mxu0 0
    %718 = vmatpush1.bf16.msra.mxu0 %v506
    %719 = vmatprep.subr.bf16.mxu0 0
    %720 = vmatpush1.bf16.msra.mxu0 %v511
    %721 = vmatprep.subr.bf16.mxu0 0
    %722 = vmatpush1.bf16.msra.mxu0 %v516
    %723 = vmatprep.subr.bf16.mxu0 0
    %724 = vmatpush1.bf16.msra.mxu0 %v521
    %725 = vmatprep.subr.bf16.mxu0 0
    %726 = vmatpush1.bf16.msra.mxu0 %v526
    %727 = vmatprep.subr.bf16.mxu0 0
    %728 = vmatpush1.bf16.msra.mxu0 %v531
    %729 = vmatprep.subr.bf16.mxu0 0
    %730 = vmatpush1.bf16.msra.mxu0 %v536
    %731 = vmatprep.mubr.bf16.mxu0 %v78
    %732 = vmatmul.mubr.bf16.gmra.mrb[0].mxu0 %v77
    %v733 = vpop.f32.mrb[0].mxu0
    %v734 = vadd.f32 %v195, %v733
    %v735 = vpop.f32.mrb[0].mxu0
    %v736 = vpop.f32.mrb[0].mxu0
    %v737 = vpop.f32.mrb[0].mxu0
    %738 = vdwg.mxu0
    %v739 = vmax.f32 %v652, 0.0
    %v740 = vmax.f32 %v654, 0.0
    %v741 = vmax.f32 %v693, 0.0
    %v742 = vmax.f32 %v695, 0.0
    %v743 = vmax.f32 %v734, 0.0
    %v744 = vpack.c.bf16 %v739, %v739
    %v745 = vpack.c.bf16 %v740, %v740
    %v746 = vpack.c.bf16 %v741, %v741
    %v747 = vpack.c.bf16 %v742, %v742
    %v748 = vpack.c.bf16 %v743, %v743
    %v749 = vld [vmem:[#allocation4] sm:$0xff]
    %v750 = vld [vmem:[#allocation4 + $0x8] sm:$0xf]
    %v751 = vld [vmem:[#allocation4 + $0xc] sm:$0xff]
    %v752 = vld [vmem:[#allocation4 + $0x14] sm:$0xf]
    %v753 = vld [vmem:[#allocation4 + $0x18] sm:$0xff]
    %v754 = vld [vmem:[#allocation4 + $0x20] sm:$0xf]
    %v755 = vld [vmem:[#allocation4 + $0x24] sm:$0xff]
    %v756 = vld [vmem:[#allocation4 + $0x2c] sm:$0xf]
    %v757 = vld [vmem:[#allocation4 + $0x30] sm:$0xff]
    %v758 = vld [vmem:[#allocation4 + $0x38] sm:$0xf]
    %v759 = vld [vmem:[#allocation4 + $0x3c] sm:$0xff]
    %v760 = vld [vmem:[#allocation4 + $0x44] sm:$0xf]
    %v761 = vld [vmem:[#allocation4 + $0x48] sm:$0xff]
    %v762 = vld [vmem:[#allocation4 + $0x50] sm:$0xf]
    %v763 = vld [vmem:[#allocation4 + $0x54] sm:$0xff]
    %v764 = vld [vmem:[#allocation4 + $0x5c] sm:$0xf]
    %v765 = vld [vmem:[#allocation4 + $0x60] sm:$0xff]
    %v766 = vld [vmem:[#allocation4 + $0x68] sm:$0xf]
    %v767 = vld [vmem:[#allocation4 + $0x6c] sm:$0xff]
    %v768 = vld [vmem:[#allocation4 + $0x74] sm:$0xf]
    %v769 = vld [vmem:[#allocation4 + $0x78] sm:$0xff]
    %v770 = vld [vmem:[#allocation4 + $0x80] sm:$0xf]
    %v771 = vld [vmem:[#allocation4 + $0x84] sm:$0xff]
    %v772 = vld [vmem:[#allocation4 + $0x8c] sm:$0xf]
    %v773 = vld [vmem:[#allocation4 + $0x90] sm:$0xff]
    %v774 = vld [vmem:[#allocation4 + $0x98] sm:$0xf]
    %v775 = vld [vmem:[#allocation4 + $0x9c] sm:$0xff]
    %v776 = vld [vmem:[#allocation4 + $0xa4] sm:$0xf]
    %v777 = vld [vmem:[#allocation4 + $0xa8] sm:$0xff]
    %v778 = vld [vmem:[#allocation4 + $0xb0] sm:$0xf]
    %v779 = vld [vmem:[#allocation4 + $0xb4] sm:$0xff]
    %v780 = vld [vmem:[#allocation4 + $0xbc] sm:$0xf]
    %v781 = vld [vmem:[#allocation4 + $0xc0] sm:$0xff]
    %v782 = vld [vmem:[#allocation4 + $0xc8] sm:$0xf]
    %v783 = vld [vmem:[#allocation4 + $0xcc] sm:$0xff]
    %v784 = vld [vmem:[#allocation4 + $0xd4] sm:$0xf]
    %v785 = vld [vmem:[#allocation4 + $0xd8] sm:$0xff]
    %v786 = vld [vmem:[#allocation4 + $0xe0] sm:$0xf]
    %v787 = vld [vmem:[#allocation4 + $0xe4] sm:$0xff]
    %v788 = vld [vmem:[#allocation4 + $0xec] sm:$0xf]
    %v789 = vld [vmem:[#allocation4 + $0xf0] sm:$0xff]
    %v790 = vld [vmem:[#allocation4 + $0xf8] sm:$0xf]
    %v791 = vld [vmem:[#allocation4 + $0xfc] sm:$0xff]
    %v792 = vld [vmem:[#allocation4 + $0x104] sm:$0xf]
    %v793 = vld [vmem:[#allocation4 + $0x108] sm:$0xff]
    %v794 = vld [vmem:[#allocation4 + $0x110] sm:$0xf]
    %v795 = vld [vmem:[#allocation4 + $0x114] sm:$0xff]
    %v796 = vld [vmem:[#allocation4 + $0x11c] sm:$0xf]
    %v797 = vld [vmem:[#allocation4 + $0x120] sm:$0xff]
    %v798 = vld [vmem:[#allocation4 + $0x128] sm:$0xf]
    %v799 = vld [vmem:[#allocation4 + $0x12c] sm:$0xff]
    %v800 = vld [vmem:[#allocation4 + $0x134] sm:$0xf]
    %v801 = vld [vmem:[#allocation4 + $0x138] sm:$0xff]
    %v802 = vld [vmem:[#allocation4 + $0x140] sm:$0xf]
    %v803 = vld [vmem:[#allocation4 + $0x144] sm:$0xff]
    %v804 = vld [vmem:[#allocation4 + $0x14c] sm:$0xf]
    %v805 = vld [vmem:[#allocation4 + $0x150] sm:$0xff]
    %v806 = vld [vmem:[#allocation4 + $0x158] sm:$0xf]
    %v807 = vld [vmem:[#allocation4 + $0x15c] sm:$0xff]
    %v808 = vld [vmem:[#allocation4 + $0x164] sm:$0xf]
    %v809 = vld [vmem:[#allocation4 + $0x168] sm:$0xff]
    %v810 = vld [vmem:[#allocation4 + $0x170] sm:$0xf]
    %v811 = vld [vmem:[#allocation4 + $0x174] sm:$0xff]
    %v812 = vld [vmem:[#allocation4 + $0x17c] sm:$0xf]
    %v813 = vld [vmem:[#allocation4 + $0x180] sm:$0xff]
    %v814 = vld [vmem:[#allocation4 + $0x188] sm:$0xf]
    %v815 = vld [vmem:[#allocation4 + $0x18c] sm:$0xff]
    %v816 = vld [vmem:[#allocation4 + $0x194] sm:$0xf]
    %v817 = vld [vmem:[#allocation4 + $0x198] sm:$0xff]
    %v818 = vld [vmem:[#allocation4 + $0x1a0] sm:$0xf]
    %v819 = vld [vmem:[#allocation4 + $0x1a4] sm:$0xff]
    %v820 = vld [vmem:[#allocation4 + $0x1ac] sm:$0xf]
    %v821 = vld [vmem:[#allocation4 + $0x1b0] sm:$0xff]
    %v822 = vld [vmem:[#allocation4 + $0x1b8] sm:$0xf]
    %v823 = vld [vmem:[#allocation4 + $0x1bc] sm:$0xff]
    %v824 = vld [vmem:[#allocation4 + $0x1c4] sm:$0xf]
    %v825 = vld [vmem:[#allocation4 + $0x1c8] sm:$0xff]
    %v826 = vld [vmem:[#allocation4 + $0x1d0] sm:$0xf]
    %v827 = vld [vmem:[#allocation4 + $0x1d4] sm:$0xff]
    %v828 = vld [vmem:[#allocation4 + $0x1dc] sm:$0xf]
    %v829 = vld [vmem:[#allocation4 + $0x1e0] sm:$0xff]
    %v830 = vld [vmem:[#allocation4 + $0x1e8] sm:$0xf]
    %v831 = vld [vmem:[#allocation4 + $0x1ec] sm:$0xff]
    %v832 = vld [vmem:[#allocation4 + $0x1f4] sm:$0xf]
    %v833 = vld [vmem:[#allocation4 + $0x1f8] sm:$0xff]
    %v834 = vld [vmem:[#allocation4 + $0x200] sm:$0xf]
    %v835 = vld [vmem:[#allocation4 + $0x204] sm:$0xff]
    %v836 = vld [vmem:[#allocation4 + $0x20c] sm:$0xf]
    %v837 = vld [vmem:[#allocation4 + $0x210] sm:$0xff]
    %v838 = vld [vmem:[#allocation4 + $0x218] sm:$0xf]
    %v839 = vld [vmem:[#allocation4 + $0x21c] sm:$0xff]
    %v840 = vld [vmem:[#allocation4 + $0x224] sm:$0xf]
    %v841 = vld [vmem:[#allocation4 + $0x228] sm:$0xff]
    %v842 = vld [vmem:[#allocation4 + $0x230] sm:$0xf]
    %v843 = vld [vmem:[#allocation4 + $0x234] sm:$0xff]
    %v844 = vld [vmem:[#allocation4 + $0x23c] sm:$0xf]
    %v845 = vld [vmem:[#allocation4 + $0x240] sm:$0xff]
    %v846 = vld [vmem:[#allocation4 + $0x248] sm:$0xf]
    %v847 = vld [vmem:[#allocation4 + $0x24c] sm:$0xff]
    %v848 = vld [vmem:[#allocation4 + $0x254] sm:$0xf]
    %v849 = vld [vmem:[#allocation4 + $0x258] sm:$0xff]
    %v850 = vld [vmem:[#allocation4 + $0x260] sm:$0xf]
    %v851 = vld [vmem:[#allocation4 + $0x264] sm:$0xff]
    %v852 = vld [vmem:[#allocation4 + $0x26c] sm:$0xf]
    %v853 = vld [vmem:[#allocation4 + $0x270] sm:$0xff]
    %v854 = vld [vmem:[#allocation4 + $0x278] sm:$0xf]
    %v855 = vld [vmem:[#allocation4 + $0x27c] sm:$0xff]
    %v856 = vld [vmem:[#allocation4 + $0x284] sm:$0xf]
    %v857 = vld [vmem:[#allocation4 + $0x288] sm:$0xff]
    %v858 = vld [vmem:[#allocation4 + $0x290] sm:$0xf]
    %v859 = vld [vmem:[#allocation4 + $0x294] sm:$0xff]
    %v860 = vld [vmem:[#allocation4 + $0x29c] sm:$0xf]
    %v861 = vld [vmem:[#allocation4 + $0x2a0] sm:$0xff]
    %v862 = vld [vmem:[#allocation4 + $0x2a8] sm:$0xf]
    %v863 = vld [vmem:[#allocation4 + $0x2ac] sm:$0xff]
    %v864 = vld [vmem:[#allocation4 + $0x2b4] sm:$0xf]
    %v865 = vld [vmem:[#allocation4 + $0x2b8] sm:$0xff]
    %v866 = vld [vmem:[#allocation4 + $0x2c0] sm:$0xf]
    %v867 = vld [vmem:[#allocation4 + $0x2c4] sm:$0xff]
    %v868 = vld [vmem:[#allocation4 + $0x2cc] sm:$0xf]
    %v869 = vld [vmem:[#allocation4 + $0x2d0] sm:$0xff]
    %v870 = vld [vmem:[#allocation4 + $0x2d8] sm:$0xf]
    %v871 = vld [vmem:[#allocation4 + $0x2dc] sm:$0xff]
    %v872 = vld [vmem:[#allocation4 + $0x2e4] sm:$0xf]
    %v873 = vld [vmem:[#allocation4 + $0x2e8] sm:$0xff]
    %v874 = vld [vmem:[#allocation4 + $0x2f0] sm:$0xf]
    %v875 = vld [vmem:[#allocation4 + $0x2f4] sm:$0xff]
    %v876 = vld [vmem:[#allocation4 + $0x2fc] sm:$0xf]
    %v877 = vld [vmem:[#allocation4 + $0x300] sm:$0xff]
    %v878 = vld [vmem:[#allocation4 + $0x308] sm:$0xf]
    %v879 = vld [vmem:[#allocation4 + $0x30c] sm:$0xff]
    %v880 = vld [vmem:[#allocation4 + $0x314] sm:$0xf]
    %v881 = vld [vmem:[#allocation4 + $0x318] sm:$0xff]
    %v882 = vld [vmem:[#allocation4 + $0x320] sm:$0xf]
    %v883 = vld [vmem:[#allocation4 + $0x324] sm:$0xff]
    %v884 = vld [vmem:[#allocation4 + $0x32c] sm:$0xf]
    %v885 = vld [vmem:[#allocation4 + $0x330] sm:$0xff]
    %v886 = vld [vmem:[#allocation4 + $0x338] sm:$0xf]
    %v887 = vld [vmem:[#allocation4 + $0x33c] sm:$0xff]
    %v888 = vld [vmem:[#allocation4 + $0x344] sm:$0xf]
    %v889 = vld [vmem:[#allocation4 + $0x348] sm:$0xff]
    %v890 = vld [vmem:[#allocation4 + $0x350] sm:$0xf]
    %v891 = vld [vmem:[#allocation4 + $0x354] sm:$0xff]
    %v892 = vld [vmem:[#allocation4 + $0x35c] sm:$0xf]
    %v893 = vld [vmem:[#allocation4 + $0x360] sm:$0xff]
    %v894 = vld [vmem:[#allocation4 + $0x368] sm:$0xf]
    %v895 = vld [vmem:[#allocation4 + $0x36c] sm:$0xff]
    %v896 = vld [vmem:[#allocation4 + $0x374] sm:$0xf]
    %v897 = vld [vmem:[#allocation4 + $0x378] sm:$0xff]
    %v898 = vld [vmem:[#allocation4 + $0x380] sm:$0xf]
    %v899 = vld [vmem:[#allocation4 + $0x384] sm:$0xff]
    %v900 = vld [vmem:[#allocation4 + $0x38c] sm:$0xf]
    %v901 = vld [vmem:[#allocation4 + $0x390] sm:$0xff]
    %v902 = vld [vmem:[#allocation4 + $0x398] sm:$0xf]
    %v903 = vld [vmem:[#allocation4 + $0x39c] sm:$0xff]
    %v904 = vld [vmem:[#allocation4 + $0x3a4] sm:$0xf]
    %v905 = vld [vmem:[#allocation4 + $0x3a8] sm:$0xff]
    %v906 = vld [vmem:[#allocation4 + $0x3b0] sm:$0xf]
    %v907 = vld [vmem:[#allocation4 + $0x3b4] sm:$0xff]
    %v908 = vld [vmem:[#allocation4 + $0x3bc] sm:$0xf]
    %v910 = vlaneseq
    %v911 = vshrl.u32 %v910, 7
    %v912 = vsub.s32 0, %v911
    %v913 = vrot.slane %v72, %v912
    %v914 = vlaneseq
    %v915 = vshrl.u32 %v914, 7
    %v916 = vsub.s32 1, %v915
    %v917 = vrot.slane %v72, %v916
    %v918 = vlaneseq
    %v919 = vshrl.u32 %v918, 7
    %v920 = vsub.s32 2, %v919
    %v921 = vrot.slane %v72, %v920
    %v1085 = vunpack.c.l.b16 %v749
    %v1086 = vunpack.c.h.b16 %v749
    %v1087 = vunpack.c.l.b16 %v750
    %v1088 = vunpack.c.l.b16 %v751
    %v1089 = vunpack.c.h.b16 %v751
    %v1090 = vunpack.c.l.b16 %v752
    %v1091 = vunpack.c.l.b16 %v753
    %v1092 = vunpack.c.h.b16 %v753
    %v1093 = vunpack.c.l.b16 %v754
    %v1094 = vunpack.c.l.b16 %v755
    %v1095 = vunpack.c.h.b16 %v755
    %v1096 = vunpack.c.l.b16 %v756
    %v1097 = vunpack.c.l.b16 %v757
    %v1098 = vunpack.c.h.b16 %v757
    %v1099 = vunpack.c.l.b16 %v758
    %v1100 = vunpack.c.l.b16 %v759
    %v1101 = vunpack.c.h.b16 %v759
    %v1102 = vunpack.c.l.b16 %v760
    %v1103 = vunpack.c.l.b16 %v761
    %v1104 = vunpack.c.h.b16 %v761
    %v1105 = vunpack.c.l.b16 %v762
    %v1106 = vunpack.c.l.b16 %v763
    %v1107 = vunpack.c.h.b16 %v763
    %v1108 = vunpack.c.l.b16 %v764
    %v1109 = vunpack.c.l.b16 %v765
    %v1110 = vunpack.c.h.b16 %v765
    %v1111 = vunpack.c.l.b16 %v766
    %v1112 = vunpack.c.l.b16 %v767
    %v1113 = vunpack.c.h.b16 %v767
    %v1114 = vunpack.c.l.b16 %v768
    %v1115 = vunpack.c.l.b16 %v769
    %v1116 = vunpack.c.h.b16 %v769
    %v1117 = vunpack.c.l.b16 %v770
    %v1118 = vunpack.c.l.b16 %v771
    %v1119 = vunpack.c.h.b16 %v771
    %v1120 = vunpack.c.l.b16 %v772
    %v1121 = vunpack.c.l.b16 %v773
    %v1122 = vunpack.c.h.b16 %v773
    %v1123 = vunpack.c.l.b16 %v774
    %v1124 = vunpack.c.l.b16 %v775
    %v1125 = vunpack.c.h.b16 %v775
    %v1126 = vunpack.c.l.b16 %v776
    %v1127 = vunpack.c.l.b16 %v777
    %v1128 = vunpack.c.h.b16 %v777
    %v1129 = vunpack.c.l.b16 %v778
    %v1130 = vunpack.c.l.b16 %v779
    %v1131 = vunpack.c.h.b16 %v779
    %v1132 = vunpack.c.l.b16 %v780
    %v1133 = vunpack.c.l.b16 %v781
    %v1134 = vunpack.c.h.b16 %v781
    %v1135 = vunpack.c.l.b16 %v782
    %v1136 = vunpack.c.l.b16 %v783
    %v1137 = vunpack.c.h.b16 %v783
    %v1138 = vunpack.c.l.b16 %v784
    %v1139 = vunpack.c.l.b16 %v785
    %v1140 = vunpack.c.h.b16 %v785
    %v1141 = vunpack.c.l.b16 %v786
    %v1142 = vunpack.c.l.b16 %v787
    %v1143 = vunpack.c.h.b16 %v787
    %v1144 = vunpack.c.l.b16 %v788
    %v1145 = vunpack.c.l.b16 %v789
    %v1146 = vunpack.c.h.b16 %v789
    %v1147 = vunpack.c.l.b16 %v790
    %v1148 = vunpack.c.l.b16 %v791
    %v1149 = vunpack.c.h.b16 %v791
    %v1150 = vunpack.c.l.b16 %v792
    %v1151 = vunpack.c.l.b16 %v793
    %v1152 = vunpack.c.h.b16 %v793
    %v1153 = vunpack.c.l.b16 %v794
    %v1154 = vunpack.c.l.b16 %v795
    %v1155 = vunpack.c.h.b16 %v795
    %v1156 = vunpack.c.l.b16 %v796
    %v1157 = vunpack.c.l.b16 %v797
    %v1158 = vunpack.c.h.b16 %v797
    %v1159 = vunpack.c.l.b16 %v798
    %v1160 = vunpack.c.l.b16 %v799
    %v1161 = vunpack.c.h.b16 %v799
    %v1162 = vunpack.c.l.b16 %v800
    %v1163 = vunpack.c.l.b16 %v801
    %v1164 = vunpack.c.h.b16 %v801
    %v1165 = vunpack.c.l.b16 %v802
    %v1166 = vunpack.c.l.b16 %v803
    %v1167 = vunpack.c.h.b16 %v803
    %v1168 = vunpack.c.l.b16 %v804
    %v1169 = vunpack.c.l.b16 %v805
    %v1170 = vunpack.c.h.b16 %v805
    %v1171 = vunpack.c.l.b16 %v806
    %v1172 = vunpack.c.l.b16 %v807
    %v1173 = vunpack.c.h.b16 %v807
    %v1174 = vunpack.c.l.b16 %v808
    %v1175 = vunpack.c.l.b16 %v809
    %v1176 = vunpack.c.h.b16 %v809
    %v1177 = vunpack.c.l.b16 %v810
    %v1178 = vunpack.c.l.b16 %v811
    %v1179 = vunpack.c.h.b16 %v811
    %v1180 = vunpack.c.l.b16 %v812
    %v1181 = vunpack.c.l.b16 %v813
    %v1182 = vunpack.c.h.b16 %v813
    %v1183 = vunpack.c.l.b16 %v814
    %v1184 = vunpack.c.l.b16 %v815
    %v1185 = vunpack.c.h.b16 %v815
    %v1186 = vunpack.c.l.b16 %v816
    %v1187 = vunpack.c.l.b16 %v817
    %v1188 = vunpack.c.h.b16 %v817
    %v1189 = vunpack.c.l.b16 %v818
    %v1190 = vunpack.c.l.b16 %v819
    %v1191 = vunpack.c.h.b16 %v819
    %v1192 = vunpack.c.l.b16 %v820
    %v1193 = vunpack.c.l.b16 %v821
    %v1194 = vunpack.c.h.b16 %v821
    %v1195 = vunpack.c.l.b16 %v822
    %v1196 = vunpack.c.l.b16 %v823
    %v1197 = vunpack.c.h.b16 %v823
    %v1198 = vunpack.c.l.b16 %v824
    %v1199 = vunpack.c.l.b16 %v825
    %v1200 = vunpack.c.h.b16 %v825
    %v1201 = vunpack.c.l.b16 %v826
    %v1202 = vunpack.c.l.b16 %v827
    %v1203 = vunpack.c.h.b16 %v827
    %v1204 = vunpack.c.l.b16 %v828
    %v1205 = vunpack.c.l.b16 %v829
    %v1206 = vunpack.c.h.b16 %v829
    %v1207 = vunpack.c.l.b16 %v830
    %v1208 = vunpack.c.l.b16 %v831
    %v1209 = vunpack.c.h.b16 %v831
    %v1210 = vunpack.c.l.b16 %v832
    %v1211 = vunpack.c.l.b16 %v833
    %v1212 = vunpack.c.h.b16 %v833
    %v1213 = vunpack.c.l.b16 %v834
    %v1214 = vunpack.c.l.b16 %v835
    %v1215 = vunpack.c.h.b16 %v835
    %v1216 = vunpack.c.l.b16 %v836
    %v1217 = vunpack.c.l.b16 %v837
    %v1218 = vunpack.c.h.b16 %v837
    %v1219 = vunpack.c.l.b16 %v838
    %v1220 = vunpack.c.l.b16 %v839
    %v1221 = vunpack.c.h.b16 %v839
    %v1222 = vunpack.c.l.b16 %v840
    %v1223 = vunpack.c.l.b16 %v841
    %v1224 = vunpack.c.h.b16 %v841
    %v1225 = vunpack.c.l.b16 %v842
    %v1226 = vunpack.c.l.b16 %v843
    %v1227 = vunpack.c.h.b16 %v843
    %v1228 = vunpack.c.l.b16 %v844
    %v1229 = vunpack.c.l.b16 %v845
    %v1230 = vunpack.c.h.b16 %v845
    %v1231 = vunpack.c.l.b16 %v846
    %v1232 = vunpack.c.l.b16 %v847
    %v1233 = vunpack.c.h.b16 %v847
    %v1234 = vunpack.c.l.b16 %v848
    %v1235 = vunpack.c.l.b16 %v849
    %v1236 = vunpack.c.h.b16 %v849
    %v1237 = vunpack.c.l.b16 %v850
    %v1238 = vunpack.c.l.b16 %v851
    %v1239 = vunpack.c.h.b16 %v851
    %v1240 = vunpack.c.l.b16 %v852
    %v1241 = vunpack.c.l.b16 %v853
    %v1242 = vunpack.c.h.b16 %v853
    %v1243 = vunpack.c.l.b16 %v854
    %v1244 = vunpack.c.l.b16 %v855
    %v1245 = vunpack.c.h.b16 %v855
    %v1246 = vunpack.c.l.b16 %v856
    %v1247 = vunpack.c.l.b16 %v857
    %v1248 = vunpack.c.h.b16 %v857
    %v1249 = vunpack.c.l.b16 %v858
    %v1250 = vunpack.c.l.b16 %v859
    %v1251 = vunpack.c.h.b16 %v859
    %v1252 = vunpack.c.l.b16 %v860
    %v1253 = vunpack.c.l.b16 %v861
    %v1254 = vunpack.c.h.b16 %v861
    %v1255 = vunpack.c.l.b16 %v862
    %v1256 = vunpack.c.l.b16 %v863
    %v1257 = vunpack.c.h.b16 %v863
    %v1258 = vunpack.c.l.b16 %v864
    %v1259 = vunpack.c.l.b16 %v865
    %v1260 = vunpack.c.h.b16 %v865
    %v1261 = vunpack.c.l.b16 %v866
    %v1262 = vunpack.c.l.b16 %v867
    %v1263 = vunpack.c.h.b16 %v867
    %v1264 = vunpack.c.l.b16 %v868
    %v1265 = vunpack.c.l.b16 %v869
    %v1266 = vunpack.c.h.b16 %v869
    %v1267 = vunpack.c.l.b16 %v870
    %v1268 = vunpack.c.l.b16 %v871
    %v1269 = vunpack.c.h.b16 %v871
    %v1270 = vunpack.c.l.b16 %v872
    %v1271 = vunpack.c.l.b16 %v873
    %v1272 = vunpack.c.h.b16 %v873
    %v1273 = vunpack.c.l.b16 %v874
    %v1274 = vunpack.c.l.b16 %v875
    %v1275 = vunpack.c.h.b16 %v875
    %v1276 = vunpack.c.l.b16 %v876
    %v1277 = vunpack.c.l.b16 %v877
    %v1278 = vunpack.c.h.b16 %v877
    %v1279 = vunpack.c.l.b16 %v878
    %v1280 = vunpack.c.l.b16 %v879
    %v1281 = vunpack.c.h.b16 %v879
    %v1282 = vunpack.c.l.b16 %v880
    %v1283 = vunpack.c.l.b16 %v881
    %v1284 = vunpack.c.h.b16 %v881
    %v1285 = vunpack.c.l.b16 %v882
    %v1286 = vunpack.c.l.b16 %v883
    %v1287 = vunpack.c.h.b16 %v883
    %v1288 = vunpack.c.l.b16 %v884
    %v1289 = vunpack.c.l.b16 %v885
    %v1290 = vunpack.c.h.b16 %v885
    %v1291 = vunpack.c.l.b16 %v886
    %v1292 = vunpack.c.l.b16 %v887
    %v1293 = vunpack.c.h.b16 %v887
    %v1294 = vunpack.c.l.b16 %v888
    %v1295 = vunpack.c.l.b16 %v889
    %v1296 = vunpack.c.h.b16 %v889
    %v1297 = vunpack.c.l.b16 %v890
    %v1298 = vunpack.c.l.b16 %v891
    %v1299 = vunpack.c.h.b16 %v891
    %v1300 = vunpack.c.l.b16 %v892
    %v1301 = vunpack.c.l.b16 %v893
    %v1302 = vunpack.c.h.b16 %v893
    %v1303 = vunpack.c.l.b16 %v894
    %v1304 = vunpack.c.l.b16 %v895
    %v1305 = vunpack.c.h.b16 %v895
    %v1306 = vunpack.c.l.b16 %v896
    %v1307 = vunpack.c.l.b16 %v897
    %v1308 = vunpack.c.h.b16 %v897
    %v1309 = vunpack.c.l.b16 %v898
    %v1310 = vunpack.c.l.b16 %v899
    %v1311 = vunpack.c.h.b16 %v899
    %v1312 = vunpack.c.l.b16 %v900
    %v1313 = vunpack.c.l.b16 %v901
    %v1314 = vunpack.c.h.b16 %v901
    %v1315 = vunpack.c.l.b16 %v902
    %v1316 = vunpack.c.l.b16 %v903
    %v1317 = vunpack.c.h.b16 %v903
    %v1318 = vunpack.c.l.b16 %v904
    %v1319 = vunpack.c.l.b16 %v905
    %v1320 = vunpack.c.h.b16 %v905
    %v1321 = vunpack.c.l.b16 %v906
    %v1322 = vunpack.c.l.b16 %v907
    %v1323 = vunpack.c.h.b16 %v907
    %v1324 = vunpack.c.l.b16 %v908
    %v1325 = vpack.c.b16 %v1088, %v1085
    %v1326 = vpack.c.b16 %v1089, %v1086
    %v1327 = vpack.c.b16 %v1090, %v1087
    %v1328 = vpack.c.b16 %v1094, %v1091
    %v1329 = vpack.c.b16 %v1095, %v1092
    %v1330 = vpack.c.b16 %v1096, %v1093
    %v1331 = vpack.c.b16 %v1100, %v1097
    %v1332 = vpack.c.b16 %v1101, %v1098
    %v1333 = vpack.c.b16 %v1102, %v1099
    %v1334 = vpack.c.b16 %v1106, %v1103
    %v1335 = vpack.c.b16 %v1107, %v1104
    %v1336 = vpack.c.b16 %v1108, %v1105
    %v1337 = vpack.c.b16 %v1112, %v1109
    %v1338 = vpack.c.b16 %v1113, %v1110
    %v1339 = vpack.c.b16 %v1114, %v1111
    %v1340 = vpack.c.b16 %v1118, %v1115
    %v1341 = vpack.c.b16 %v1119, %v1116
    %v1342 = vpack.c.b16 %v1120, %v1117
    %v1343 = vpack.c.b16 %v1124, %v1121
    %v1344 = vpack.c.b16 %v1125, %v1122
    %v1345 = vpack.c.b16 %v1126, %v1123
    %v1346 = vpack.c.b16 %v1130, %v1127
    %v1347 = vpack.c.b16 %v1131, %v1128
    %v1348 = vpack.c.b16 %v1132, %v1129
    %v1349 = vpack.c.b16 %v1136, %v1133
    %v1350 = vpack.c.b16 %v1137, %v1134
    %v1351 = vpack.c.b16 %v1138, %v1135
    %v1352 = vpack.c.b16 %v1142, %v1139
    %v1353 = vpack.c.b16 %v1143, %v1140
    %v1354 = vpack.c.b16 %v1144, %v1141
    %v1355 = vpack.c.b16 %v1148, %v1145
    %v1356 = vpack.c.b16 %v1149, %v1146
    %v1357 = vpack.c.b16 %v1150, %v1147
    %v1358 = vpack.c.b16 %v1154, %v1151
    %v1359 = vpack.c.b16 %v1155, %v1152
    %v1360 = vpack.c.b16 %v1156, %v1153
    %v1361 = vpack.c.b16 %v1160, %v1157
    %v1362 = vpack.c.b16 %v1161, %v1158
    %v1363 = vpack.c.b16 %v1162, %v1159
    %v1364 = vpack.c.b16 %v1166, %v1163
    %v1365 = vpack.c.b16 %v1167, %v1164
    %v1366 = vpack.c.b16 %v1168, %v1165
    %v1367 = vpack.c.b16 %v1172, %v1169
    %v1368 = vpack.c.b16 %v1173, %v1170
    %v1369 = vpack.c.b16 %v1174, %v1171
    %v1370 = vpack.c.b16 %v1178, %v1175
    %v1371 = vpack.c.b16 %v1179, %v1176
    %v1372 = vpack.c.b16 %v1180, %v1177
    %v1373 = vpack.c.b16 %v1184, %v1181
    %v1374 = vpack.c.b16 %v1185, %v1182
    %v1375 = vpack.c.b16 %v1186, %v1183
    %v1376 = vpack.c.b16 %v1190, %v1187
    %v1377 = vpack.c.b16 %v1191, %v1188
    %v1378 = vpack.c.b16 %v1192, %v1189
    %v1379 = vpack.c.b16 %v1196, %v1193
    %v1380 = vpack.c.b16 %v1197, %v1194
    %v1381 = vpack.c.b16 %v1198, %v1195
    %v1382 = vpack.c.b16 %v1202, %v1199
    %v1383 = vpack.c.b16 %v1203, %v1200
    %v1384 = vpack.c.b16 %v1204, %v1201
    %v1385 = vpack.c.b16 %v1208, %v1205
    %v1386 = vpack.c.b16 %v1209, %v1206
    %v1387 = vpack.c.b16 %v1210, %v1207
    %v1388 = vpack.c.b16 %v1214, %v1211
    %v1389 = vpack.c.b16 %v1215, %v1212
    %v1390 = vpack.c.b16 %v1216, %v1213
    %v1391 = vpack.c.b16 %v1220, %v1217
    %v1392 = vpack.c.b16 %v1221, %v1218
    %v1393 = vpack.c.b16 %v1222, %v1219
    %v1394 = vpack.c.b16 %v1226, %v1223
    %v1395 = vpack.c.b16 %v1227, %v1224
    %v1396 = vpack.c.b16 %v1228, %v1225
    %v1397 = vpack.c.b16 %v1232, %v1229
    %v1398 = vpack.c.b16 %v1233, %v1230
    %v1399 = vpack.c.b16 %v1234, %v1231
    %v1400 = vpack.c.b16 %v1238, %v1235
    %v1401 = vpack.c.b16 %v1239, %v1236
    %v1402 = vpack.c.b16 %v1240, %v1237
    %v1403 = vpack.c.b16 %v1244, %v1241
    %v1404 = vpack.c.b16 %v1245, %v1242
    %v1405 = vpack.c.b16 %v1246, %v1243
    %v1406 = vpack.c.b16 %v1250, %v1247
    %v1407 = vpack.c.b16 %v1251, %v1248
    %v1408 = vpack.c.b16 %v1252, %v1249
    %v1409 = vpack.c.b16 %v1256, %v1253
    %v1410 = vpack.c.b16 %v1257, %v1254
    %v1411 = vpack.c.b16 %v1258, %v1255
    %v1412 = vpack.c.b16 %v1262, %v1259
    %v1413 = vpack.c.b16 %v1263, %v1260
    %v1414 = vpack.c.b16 %v1264, %v1261
    %v1415 = vpack.c.b16 %v1268, %v1265
    %v1416 = vpack.c.b16 %v1269, %v1266
    %v1417 = vpack.c.b16 %v1270, %v1267
    %v1418 = vpack.c.b16 %v1274, %v1271
    %v1419 = vpack.c.b16 %v1275, %v1272
    %v1420 = vpack.c.b16 %v1276, %v1273
    %v1421 = vpack.c.b16 %v1280, %v1277
    %v1422 = vpack.c.b16 %v1281, %v1278
    %v1423 = vpack.c.b16 %v1282, %v1279
    %v1424 = vpack.c.b16 %v1286, %v1283
    %v1425 = vpack.c.b16 %v1287, %v1284
    %v1426 = vpack.c.b16 %v1288, %v1285
    %v1427 = vpack.c.b16 %v1292, %v1289
    %v1428 = vpack.c.b16 %v1293, %v1290
    %v1429 = vpack.c.b16 %v1294, %v1291
    %v1430 = vpack.c.b16 %v1298, %v1295
    %v1431 = vpack.c.b16 %v1299, %v1296
    %v1432 = vpack.c.b16 %v1300, %v1297
    %v1433 = vpack.c.b16 %v1304, %v1301
    %v1434 = vpack.c.b16 %v1305, %v1302
    %v1435 = vpack.c.b16 %v1306, %v1303
    %v1436 = vpack.c.b16 %v1310, %v1307
    %v1437 = vpack.c.b16 %v1311, %v1308
    %v1438 = vpack.c.b16 %v1312, %v1309
    %v1439 = vpack.c.b16 %v1316, %v1313
    %v1440 = vpack.c.b16 %v1317, %v1314
    %v1441 = vpack.c.b16 %v1318, %v1315
    %v1442 = vpack.c.b16 %v1322, %v1319
    %v1443 = vpack.c.b16 %v1323, %v1320
    %v1444 = vpack.c.b16 %v1324, %v1321
    %1565 = vmatprep.subr.bf16.mxu0 %v1326
    %1566 = vmatpush1.bf16.msra.mxu0 %v1325
    %1567 = vmatprep.subr.bf16.mxu0 %v1329
    %1568 = vmatpush1.bf16.msra.mxu0 %v1328
    %1569 = vmatprep.subr.bf16.mxu0 %v1332
    %1570 = vmatpush1.bf16.msra.mxu0 %v1331
    %1571 = vmatprep.subr.bf16.mxu0 %v1335
    %1572 = vmatpush1.bf16.msra.mxu0 %v1334
    %1573 = vmatprep.subr.bf16.mxu0 %v1338
    %1574 = vmatpush1.bf16.msra.mxu0 %v1337
    %1575 = vmatprep.subr.bf16.mxu0 %v1341
    %1576 = vmatpush1.bf16.msra.mxu0 %v1340
    %1577 = vmatprep.subr.bf16.mxu0 %v1344
    %1578 = vmatpush1.bf16.msra.mxu0 %v1343
    %1579 = vmatprep.subr.bf16.mxu0 %v1347
    %1580 = vmatpush1.bf16.msra.mxu0 %v1346
    %1581 = vmatprep.subr.bf16.mxu0 %v1350
    %1582 = vmatpush1.bf16.msra.mxu0 %v1349
    %1583 = vmatprep.subr.bf16.mxu0 %v1353
    %1584 = vmatpush1.bf16.msra.mxu0 %v1352
    %1585 = vmatprep.subr.bf16.mxu0 %v1356
    %1586 = vmatpush1.bf16.msra.mxu0 %v1355
    %1587 = vmatprep.subr.bf16.mxu0 %v1359
    %1588 = vmatpush1.bf16.msra.mxu0 %v1358
    %1589 = vmatprep.subr.bf16.mxu0 %v1362
    %1590 = vmatpush1.bf16.msra.mxu0 %v1361
    %1591 = vmatprep.subr.bf16.mxu0 %v1365
    %1592 = vmatpush1.bf16.msra.mxu0 %v1364
    %1593 = vmatprep.subr.bf16.mxu0 %v1368
    %1594 = vmatpush1.bf16.msra.mxu0 %v1367
    %1595 = vmatprep.subr.bf16.mxu0 %v1371
    %1596 = vmatpush1.bf16.msra.mxu0 %v1370
    %1597 = vmatprep.mubr.bf16.mxu0 %v745
    %1598 = vmatmul.mubr.bf16.gmra.mrb[0].mxu0 %v744
    %v1599 = vpop.f32.mrb[0].mxu0
    %v1600 = vadd.f32 %v913, %v1599
    %v1601 = vpop.f32.mrb[0].mxu0
    %v1602 = vadd.f32 %v917, %v1601
    %v1603 = vpop.f32.mrb[0].mxu0
    %v1604 = vpop.f32.mrb[0].mxu0
    %1605 = vdwg.mxu0
    %1606 = vmatprep.subr.bf16.mxu0 %v1374
    %1607 = vmatpush1.bf16.msra.mxu0 %v1373
    %1608 = vmatprep.subr.bf16.mxu0 %v1377
    %1609 = vmatpush1.bf16.msra.mxu0 %v1376
    %1610 = vmatprep.subr.bf16.mxu0 %v1380
    %1611 = vmatpush1.bf16.msra.mxu0 %v1379
    %1612 = vmatprep.subr.bf16.mxu0 %v1383
    %1613 = vmatpush1.bf16.msra.mxu0 %v1382
    %1614 = vmatprep.subr.bf16.mxu0 %v1386
    %1615 = vmatpush1.bf16.msra.mxu0 %v1385
    %1616 = vmatprep.subr.bf16.mxu0 %v1389
    %1617 = vmatpush1.bf16.msra.mxu0 %v1388
    %1618 = vmatprep.subr.bf16.mxu0 %v1392
    %1619 = vmatpush1.bf16.msra.mxu0 %v1391
    %1620 = vmatprep.subr.bf16.mxu0 %v1395
    %1621 = vmatpush1.bf16.msra.mxu0 %v1394
    %1622 = vmatprep.subr.bf16.mxu0 %v1398
    %1623 = vmatpush1.bf16.msra.mxu0 %v1397
    %1624 = vmatprep.subr.bf16.mxu0 %v1401
    %1625 = vmatpush1.bf16.msra.mxu0 %v1400
    %1626 = vmatprep.subr.bf16.mxu0 %v1404
    %1627 = vmatpush1.bf16.msra.mxu0 %v1403
    %1628 = vmatprep.subr.bf16.mxu0 %v1407
    %1629 = vmatpush1.bf16.msra.mxu0 %v1406
    %1630 = vmatprep.subr.bf16.mxu0 %v1410
    %1631 = vmatpush1.bf16.msra.mxu0 %v1409
    %1632 = vmatprep.subr.bf16.mxu0 %v1413
    %1633 = vmatpush1.bf16.msra.mxu0 %v1412
    %1634 = vmatprep.subr.bf16.mxu0 %v1416
    %1635 = vmatpush1.bf16.msra.mxu0 %v1415
    %1636 = vmatprep.subr.bf16.mxu0 %v1419
    %1637 = vmatpush1.bf16.msra.mxu0 %v1418
    %1638 = vmatprep.mubr.bf16.mxu0 %v747
    %1639 = vmatmul.mubr.bf16.gmra.mrb[0].mxu0 %v746
    %v1640 = vpop.f32.mrb[0].mxu0
    %v1641 = vadd.f32 %v1600, %v1640
    %v1642 = vpop.f32.mrb[0].mxu0
    %v1643 = vadd.f32 %v1602, %v1642
    %v1644 = vpop.f32.mrb[0].mxu0
    %v1645 = vpop.f32.mrb[0].mxu0
    %1646 = vdwg.mxu0
    %1647 = vmatprep.subr.bf16.mxu0 %v1422
    %1648 = vmatpush1.bf16.msra.mxu0 %v1421
    %1649 = vmatprep.subr.bf16.mxu0 %v1425
    %1650 = vmatpush1.bf16.msra.mxu0 %v1424
    %1651 = vmatprep.subr.bf16.mxu0 %v1428
    %1652 = vmatpush1.bf16.msra.mxu0 %v1427
    %1653 = vmatprep.subr.bf16.mxu0 %v1431
    %1654 = vmatpush1.bf16.msra.mxu0 %v1430
    %1655 = vmatprep.subr.bf16.mxu0 %v1434
    %1656 = vmatpush1.bf16.msra.mxu0 %v1433
    %1657 = vmatprep.subr.bf16.mxu0 %v1437
    %1658 = vmatpush1.bf16.msra.mxu0 %v1436
    %1659 = vmatprep.subr.bf16.mxu0 %v1440
    %1660 = vmatpush1.bf16.msra.mxu0 %v1439
    %1661 = vmatprep.subr.bf16.mxu0 %v1443
    %1662 = vmatpush1.bf16.msra.mxu0 %v1442
    %1663 = vmatprep.subr.bf16.mxu0 0
    %1664 = vmatpush1.bf16.msra.mxu0 0
    %1665 = vmatprep.subr.bf16.mxu0 0
    %1666 = vmatpush1.bf16.msra.mxu0 0
    %1667 = vmatprep.subr.bf16.mxu0 0
    %1668 = vmatpush1.bf16.msra.mxu0 0
    %1669 = vmatprep.subr.bf16.mxu0 0
    %1670 = vmatpush1.bf16.msra.mxu0 0
    %1671 = vmatprep.subr.bf16.mxu0 0
    %1672 = vmatpush1.bf16.msra.mxu0 0
    %1673 = vmatprep.subr.bf16.mxu0 0
    %1674 = vmatpush1.bf16.msra.mxu0 0
    %1675 = vmatprep.subr.bf16.mxu0 0
    %1676 = vmatpush1.bf16.msra.mxu0 0
    %1677 = vmatprep.subr.bf16.mxu0 0
    %1678 = vmatpush1.bf16.msra.mxu0 0
    %1679 = vmatprep.mubr.bf16.mxu0 0
    %1680 = vmatmul.mubr.bf16.gmra.mrb[0].mxu0 %v748
    %v1681 = vpop.f32.mrb[0].mxu0
    %v1682 = vadd.f32 %v1641, %v1681
    %v1683 = vpop.f32.mrb[0].mxu0
    %v1684 = vadd.f32 %v1643, %v1683
    %v1685 = vpop.f32.mrb[0].mxu0
    %v1686 = vpop.f32.mrb[0].mxu0
    %1687 = vdwg.mxu0
    %1688 = vmatprep.subr.bf16.mxu0 0
    %1689 = vmatpush1.bf16.msra.mxu0 %v1327
    %1690 = vmatprep.subr.bf16.mxu0 0
    %1691 = vmatpush1.bf16.msra.mxu0 %v1330
    %1692 = vmatprep.subr.bf16.mxu0 0
    %1693 = vmatpush1.bf16.msra.mxu0 %v1333
    %1694 = vmatprep.subr.bf16.mxu0 0
    %1695 = vmatpush1.bf16.msra.mxu0 %v1336
    %1696 = vmatprep.subr.bf16.mxu0 0
    %1697 = vmatpush1.bf16.msra.mxu0 %v1339
    %1698 = vmatprep.subr.bf16.mxu0 0
    %1699 = vmatpush1.bf16.msra.mxu0 %v1342
    %1700 = vmatprep.subr.bf16.mxu0 0
    %1701 = vmatpush1.bf16.msra.mxu0 %v1345
    %1702 = vmatprep.subr.bf16.mxu0 0
    %1703 = vmatpush1.bf16.msra.mxu0 %v1348
    %1704 = vmatprep.subr.bf16.mxu0 0
    %1705 = vmatpush1.bf16.msra.mxu0 %v1351
    %1706 = vmatprep.subr.bf16.mxu0 0
    %1707 = vmatpush1.bf16.msra.mxu0 %v1354
    %1708 = vmatprep.subr.bf16.mxu0 0
    %1709 = vmatpush1.bf16.msra.mxu0 %v1357
    %1710 = vmatprep.subr.bf16.mxu0 0
    %1711 = vmatpush1.bf16.msra.mxu0 %v1360
    %1712 = vmatprep.subr.bf16.mxu0 0
    %1713 = vmatpush1.bf16.msra.mxu0 %v1363
    %1714 = vmatprep.subr.bf16.mxu0 0
    %1715 = vmatpush1.bf16.msra.mxu0 %v1366
    %1716 = vmatprep.subr.bf16.mxu0 0
    %1717 = vmatpush1.bf16.msra.mxu0 %v1369
    %1718 = vmatprep.subr.bf16.mxu0 0
    %1719 = vmatpush1.bf16.msra.mxu0 %v1372
    %1720 = vmatprep.mubr.bf16.mxu0 %v745
    %1721 = vmatmul.mubr.bf16.gmra.mrb[0].mxu0 %v744
    %v1722 = vpop.f32.mrb[0].mxu0
    %v1723 = vadd.f32 %v921, %v1722
    %v1724 = vpop.f32.mrb[0].mxu0
    %v1725 = vpop.f32.mrb[0].mxu0
    %v1726 = vpop.f32.mrb[0].mxu0
    %1727 = vdwg.mxu0
    %1728 = vmatprep.subr.bf16.mxu0 0
    %1729 = vmatpush1.bf16.msra.mxu0 %v1375
    %1730 = vmatprep.subr.bf16.mxu0 0
    %1731 = vmatpush1.bf16.msra.mxu0 %v1378
    %1732 = vmatprep.subr.bf16.mxu0 0
    %1733 = vmatpush1.bf16.msra.mxu0 %v1381
    %1734 = vmatprep.subr.bf16.mxu0 0
    %1735 = vmatpush1.bf16.msra.mxu0 %v1384
    %1736 = vmatprep.subr.bf16.mxu0 0
    %1737 = vmatpush1.bf16.msra.mxu0 %v1387
    %1738 = vmatprep.subr.bf16.mxu0 0
    %1739 = vmatpush1.bf16.msra.mxu0 %v1390
    %1740 = vmatprep.subr.bf16.mxu0 0
    %1741 = vmatpush1.bf16.msra.mxu0 %v1393
    %1742 = vmatprep.subr.bf16.mxu0 0
    %1743 = vmatpush1.bf16.msra.mxu0 %v1396
    %1744 = vmatprep.subr.bf16.mxu0 0
    %1745 = vmatpush1.bf16.msra.mxu0 %v1399
    %1746 = vmatprep.subr.bf16.mxu0 0
    %1747 = vmatpush1.bf16.msra.mxu0 %v1402
    %1748 = vmatprep.subr.bf16.mxu0 0
    %1749 = vmatpush1.bf16.msra.mxu0 %v1405
    %1750 = vmatprep.subr.bf16.mxu0 0
    %1751 = vmatpush1.bf16.msra.mxu0 %v1408
    %1752 = vmatprep.subr.bf16.mxu0 0
    %1753 = vmatpush1.bf16.msra.mxu0 %v1411
    %1754 = vmatprep.subr.bf16.mxu0 0
    %1755 = vmatpush1.bf16.msra.mxu0 %v1414
    %1756 = vmatprep.subr.bf16.mxu0 0
    %1757 = vmatpush1.bf16.msra.mxu0 %v1417
    %1758 = vmatprep.subr.bf16.mxu0 0
    %1759 = vmatpush1.bf16.msra.mxu0 %v1420
    %1760 = vmatprep.mubr.bf16.mxu0 %v747
    %1761 = vmatmul.mubr.bf16.gmra.mrb[0].mxu0 %v746
    %v1762 = vpop.f32.mrb[0].mxu0
    %v1763 = vadd.f32 %v1723, %v1762
    %v1764 = vpop.f32.mrb[0].mxu0
    %v1765 = vpop.f32.mrb[0].mxu0
    %v1766 = vpop.f32.mrb[0].mxu0
    %1767 = vdwg.mxu0
    %1768 = vmatprep.subr.bf16.mxu0 0
    %1769 = vmatpush1.bf16.msra.mxu0 %v1423
    %1770 = vmatprep.subr.bf16.mxu0 0
    %1771 = vmatpush1.bf16.msra.mxu0 %v1426
    %1772 = vmatprep.subr.bf16.mxu0 0
    %1773 = vmatpush1.bf16.msra.mxu0 %v1429
    %1774 = vmatprep.subr.bf16.mxu0 0
    %1775 = vmatpush1.bf16.msra.mxu0 %v1432
    %1776 = vmatprep.subr.bf16.mxu0 0
    %1777 = vmatpush1.bf16.msra.mxu0 %v1435
    %1778 = vmatprep.subr.bf16.mxu0 0
    %1779 = vmatpush1.bf16.msra.mxu0 %v1438
    %1780 = vmatprep.subr.bf16.mxu0 0
    %1781 = vmatpush1.bf16.msra.mxu0 %v1441
    %1782 = vmatprep.subr.bf16.mxu0 0
    %1783 = vmatpush1.bf16.msra.mxu0 %v1444
    %1784 = vmatprep.subr.bf16.mxu0 0
    %1785 = vmatpush1.bf16.msra.mxu0 0
    %1786 = vmatprep.subr.bf16.mxu0 0
    %1787 = vmatpush1.bf16.msra.mxu0 0
    %1788 = vmatprep.subr.bf16.mxu0 0
    %1789 = vmatpush1.bf16.msra.mxu0 0
    %1790 = vmatprep.subr.bf16.mxu0 0
    %1791 = vmatpush1.bf16.msra.mxu0 0
    %1792 = vmatprep.subr.bf16.mxu0 0
    %1793 = vmatpush1.bf16.msra.mxu0 0
    %1794 = vmatprep.subr.bf16.mxu0 0
    %1795 = vmatpush1.bf16.msra.mxu0 0
    %1796 = vmatprep.subr.bf16.mxu0 0
    %1797 = vmatpush1.bf16.msra.mxu0 0
    %1798 = vmatprep.subr.bf16.mxu0 0
    %1799 = vmatpush1.bf16.msra.mxu0 0
    %1800 = vmatprep.mubr.bf16.mxu0 0
    %1801 = vmatmul.mubr.bf16.gmra.mrb[0].mxu0 %v748
    %v1802 = vpop.f32.mrb[0].mxu0
    %v1803 = vadd.f32 %v1763, %v1802
    %v1804 = vpop.f32.mrb[0].mxu0
    %v1805 = vpop.f32.mrb[0].mxu0
    %v1806 = vpop.f32.mrb[0].mxu0
    %1807 = vdwg.mxu0
    %v1808 = vmax.f32 %v1682, 0.0
    %v1809 = vmax.f32 %v1684, 0.0
    %v1810 = vmax.f32 %v1803, 0.0
    %v1811 = vld [vmem:[%s0] sm:$0xff]
    %v1812 = vpack.c.bf16 %v1811, %v1811
    %v1813 = vld [vmem:[%s4] sm:$0xff]
    %v1814 = vpack.c.bf16 %v1808, %v1808
    %v1815 = vpack.c.bf16 %v1809, %v1809
    %v1816 = vpack.c.bf16 %v1810, %v1810
    %v1817 = vld [vmem:[#allocation6] sm:$0xff]
    %v1818 = vld [vmem:[#allocation6 + $0x8] sm:$0xff]
    %v1819 = vld [vmem:[#allocation6 + $0x10] sm:$0xff]
    %v1820 = vld [vmem:[#allocation6 + $0x18] sm:$0xff]
    %v1821 = vld [vmem:[#allocation6 + $0x20] sm:$0xff]
    %v1822 = vld [vmem:[#allocation6 + $0x28] sm:$0xff]
    %v1823 = vld [vmem:[#allocation6 + $0x30] sm:$0xff]
    %v1824 = vld [vmem:[#allocation6 + $0x38] sm:$0xff]
    %v1825 = vld [vmem:[#allocation6 + $0x40] sm:$0xff]
    %v1826 = vld [vmem:[#allocation6 + $0x48] sm:$0xff]
    %v1827 = vld [vmem:[#allocation6 + $0x50] sm:$0xff]
    %v1828 = vld [vmem:[#allocation6 + $0x58] sm:$0xff]
    %v1829 = vld [vmem:[#allocation6 + $0x60] sm:$0xff]
    %v1830 = vld [vmem:[#allocation6 + $0x68] sm:$0xff]
    %v1831 = vld [vmem:[#allocation6 + $0x70] sm:$0xff]
    %v1832 = vld [vmem:[#allocation6 + $0x78] sm:$0xff]
    %v1833 = vld [vmem:[#allocation6 + $0x80] sm:$0xff]
    %v1834 = vld [vmem:[#allocation6 + $0x88] sm:$0xff]
    %v1835 = vld [vmem:[#allocation6 + $0x90] sm:$0xff]
    %v1836 = vld [vmem:[#allocation6 + $0x98] sm:$0xff]
    %v1837 = vld [vmem:[#allocation6 + $0xa0] sm:$0xff]
    %v1838 = vld [vmem:[#allocation6 + $0xa8] sm:$0xff]
    %v1839 = vld [vmem:[#allocation6 + $0xb0] sm:$0xff]
    %v1840 = vld [vmem:[#allocation6 + $0xb8] sm:$0xff]
    %v1841 = vld [vmem:[#allocation6 + $0xc0] sm:$0xff]
    %v1842 = vld [vmem:[#allocation6 + $0xc8] sm:$0xff]
    %v1843 = vld [vmem:[#allocation6 + $0xd0] sm:$0xff]
    %v1844 = vld [vmem:[#allocation6 + $0xd8] sm:$0xff]
    %v1845 = vld [vmem:[#allocation6 + $0xe0] sm:$0xff]
    %v1846 = vld [vmem:[#allocation6 + $0xe8] sm:$0xff]
    %v1847 = vld [vmem:[#allocation6 + $0xf0] sm:$0xff]
    %v1848 = vld [vmem:[#allocation6 + $0xf8] sm:$0xff]
    %v1849 = vld [vmem:[#allocation6 + $0x100] sm:$0xff]
    %v1850 = vld [vmem:[#allocation6 + $0x108] sm:$0xff]
    %v1851 = vld [vmem:[#allocation6 + $0x110] sm:$0xff]
    %v1852 = vld [vmem:[#allocation6 + $0x118] sm:$0xff]
    %v1853 = vld [vmem:[#allocation6 + $0x120] sm:$0xff]
    %v1854 = vld [vmem:[#allocation6 + $0x128] sm:$0xff]
    %v1855 = vld [vmem:[#allocation6 + $0x130] sm:$0xff]
    %v1856 = vld [vmem:[#allocation6 + $0x138] sm:$0xff]
    %v1857 = vld [vmem:[#allocation6 + $0x140] sm:$0xff]
    %v1858 = vld [vmem:[#allocation6 + $0x148] sm:$0xff]
    %v1859 = vld [vmem:[#allocation6 + $0x150] sm:$0xff]
    %v1860 = vld [vmem:[#allocation6 + $0x158] sm:$0xff]
    %v1861 = vld [vmem:[#allocation6 + $0x160] sm:$0xff]
    %v1862 = vld [vmem:[#allocation6 + $0x168] sm:$0xff]
    %v1863 = vld [vmem:[#allocation6 + $0x170] sm:$0xff]
    %v1864 = vld [vmem:[#allocation6 + $0x178] sm:$0xff]
    %v1913 = vunpack.c.l.b16 %v1817
    %v1914 = vunpack.c.h.b16 %v1817
    %v1915 = vunpack.c.l.b16 %v1818
    %v1916 = vunpack.c.h.b16 %v1818
    %v1917 = vunpack.c.l.b16 %v1819
    %v1918 = vunpack.c.h.b16 %v1819
    %v1919 = vunpack.c.l.b16 %v1820
    %v1920 = vunpack.c.h.b16 %v1820
    %v1921 = vunpack.c.l.b16 %v1821
    %v1922 = vunpack.c.h.b16 %v1821
    %v1923 = vunpack.c.l.b16 %v1822
    %v1924 = vunpack.c.h.b16 %v1822
    %v1925 = vunpack.c.l.b16 %v1823
    %v1926 = vunpack.c.h.b16 %v1823
    %v1927 = vunpack.c.l.b16 %v1824
    %v1928 = vunpack.c.h.b16 %v1824
    %v1929 = vunpack.c.l.b16 %v1825
    %v1930 = vunpack.c.h.b16 %v1825
    %v1931 = vunpack.c.l.b16 %v1826
    %v1932 = vunpack.c.h.b16 %v1826
    %v1933 = vunpack.c.l.b16 %v1827
    %v1934 = vunpack.c.h.b16 %v1827
    %v1935 = vunpack.c.l.b16 %v1828
    %v1936 = vunpack.c.h.b16 %v1828
    %v1937 = vunpack.c.l.b16 %v1829
    %v1938 = vunpack.c.h.b16 %v1829
    %v1939 = vunpack.c.l.b16 %v1830
    %v1940 = vunpack.c.h.b16 %v1830
    %v1941 = vunpack.c.l.b16 %v1831
    %v1942 = vunpack.c.h.b16 %v1831
    %v1943 = vunpack.c.l.b16 %v1832
    %v1944 = vunpack.c.h.b16 %v1832
    %v1945 = vunpack.c.l.b16 %v1833
    %v1946 = vunpack.c.h.b16 %v1833
    %v1947 = vunpack.c.l.b16 %v1834
    %v1948 = vunpack.c.h.b16 %v1834
    %v1949 = vunpack.c.l.b16 %v1835
    %v1950 = vunpack.c.h.b16 %v1835
    %v1951 = vunpack.c.l.b16 %v1836
    %v1952 = vunpack.c.h.b16 %v1836
    %v1953 = vunpack.c.l.b16 %v1837
    %v1954 = vunpack.c.h.b16 %v1837
    %v1955 = vunpack.c.l.b16 %v1838
    %v1956 = vunpack.c.h.b16 %v1838
    %v1957 = vunpack.c.l.b16 %v1839
    %v1958 = vunpack.c.h.b16 %v1839
    %v1959 = vunpack.c.l.b16 %v1840
    %v1960 = vunpack.c.h.b16 %v1840
    %v1961 = vunpack.c.l.b16 %v1841
    %v1962 = vunpack.c.h.b16 %v1841
    %v1963 = vunpack.c.l.b16 %v1842
    %v1964 = vunpack.c.h.b16 %v1842
    %v1965 = vunpack.c.l.b16 %v1843
    %v1966 = vunpack.c.h.b16 %v1843
    %v1967 = vunpack.c.l.b16 %v1844
    %v1968 = vunpack.c.h.b16 %v1844
    %v1969 = vunpack.c.l.b16 %v1845
    %v1970 = vunpack.c.h.b16 %v1845
    %v1971 = vunpack.c.l.b16 %v1846
    %v1972 = vunpack.c.h.b16 %v1846
    %v1973 = vunpack.c.l.b16 %v1847
    %v1974 = vunpack.c.h.b16 %v1847
    %v1975 = vunpack.c.l.b16 %v1848
    %v1976 = vunpack.c.h.b16 %v1848
    %v1977 = vunpack.c.l.b16 %v1849
    %v1978 = vunpack.c.h.b16 %v1849
    %v1979 = vunpack.c.l.b16 %v1850
    %v1980 = vunpack.c.h.b16 %v1850
    %v1981 = vunpack.c.l.b16 %v1851
    %v1982 = vunpack.c.h.b16 %v1851
    %v1983 = vunpack.c.l.b16 %v1852
    %v1984 = vunpack.c.h.b16 %v1852
    %v1985 = vunpack.c.l.b16 %v1853
    %v1986 = vunpack.c.h.b16 %v1853
    %v1987 = vunpack.c.l.b16 %v1854
    %v1988 = vunpack.c.h.b16 %v1854
    %v1989 = vunpack.c.l.b16 %v1855
    %v1990 = vunpack.c.h.b16 %v1855
    %v1991 = vunpack.c.l.b16 %v1856
    %v1992 = vunpack.c.h.b16 %v1856
    %v1993 = vunpack.c.l.b16 %v1857
    %v1994 = vunpack.c.h.b16 %v1857
    %v1995 = vunpack.c.l.b16 %v1858
    %v1996 = vunpack.c.h.b16 %v1858
    %v1997 = vunpack.c.l.b16 %v1859
    %v1998 = vunpack.c.h.b16 %v1859
    %v1999 = vunpack.c.l.b16 %v1860
    %v2000 = vunpack.c.h.b16 %v1860
    %v2001 = vunpack.c.l.b16 %v1861
    %v2002 = vunpack.c.h.b16 %v1861
    %v2003 = vunpack.c.l.b16 %v1862
    %v2004 = vunpack.c.h.b16 %v1862
    %v2005 = vunpack.c.l.b16 %v1863
    %v2006 = vunpack.c.h.b16 %v1863
    %v2007 = vunpack.c.l.b16 %v1864
    %v2008 = vunpack.c.h.b16 %v1864
    %v2009 = vpack.c.b16 %v1915, %v1913
    %v2010 = vpack.c.b16 %v1916, %v1914
    %v2011 = vpack.c.b16 %v1919, %v1917
    %v2012 = vpack.c.b16 %v1920, %v1918
    %v2013 = vpack.c.b16 %v1923, %v1921
    %v2014 = vpack.c.b16 %v1924, %v1922
    %v2015 = vpack.c.b16 %v1927, %v1925
    %v2016 = vpack.c.b16 %v1928, %v1926
    %v2017 = vpack.c.b16 %v1931, %v1929
    %v2018 = vpack.c.b16 %v1932, %v1930
    %v2019 = vpack.c.b16 %v1935, %v1933
    %v2020 = vpack.c.b16 %v1936, %v1934
    %v2021 = vpack.c.b16 %v1939, %v1937
    %v2022 = vpack.c.b16 %v1940, %v1938
    %v2023 = vpack.c.b16 %v1943, %v1941
    %v2024 = vpack.c.b16 %v1944, %v1942
    %v2025 = vpack.c.b16 %v1947, %v1945
    %v2026 = vpack.c.b16 %v1948, %v1946
    %v2027 = vpack.c.b16 %v1951, %v1949
    %v2028 = vpack.c.b16 %v1952, %v1950
    %v2029 = vpack.c.b16 %v1955, %v1953
    %v2030 = vpack.c.b16 %v1956, %v1954
    %v2031 = vpack.c.b16 %v1959, %v1957
    %v2032 = vpack.c.b16 %v1960, %v1958
    %v2033 = vpack.c.b16 %v1963, %v1961
    %v2034 = vpack.c.b16 %v1964, %v1962
    %v2035 = vpack.c.b16 %v1967, %v1965
    %v2036 = vpack.c.b16 %v1968, %v1966
    %v2037 = vpack.c.b16 %v1971, %v1969
    %v2038 = vpack.c.b16 %v1972, %v1970
    %v2039 = vpack.c.b16 %v1975, %v1973
    %v2040 = vpack.c.b16 %v1976, %v1974
    %v2041 = vpack.c.b16 %v1979, %v1977
    %v2042 = vpack.c.b16 %v1980, %v1978
    %v2043 = vpack.c.b16 %v1983, %v1981
    %v2044 = vpack.c.b16 %v1984, %v1982
    %v2045 = vpack.c.b16 %v1987, %v1985
    %v2046 = vpack.c.b16 %v1988, %v1986
    %v2047 = vpack.c.b16 %v1991, %v1989
    %v2048 = vpack.c.b16 %v1992, %v1990
    %v2049 = vpack.c.b16 %v1995, %v1993
    %v2050 = vpack.c.b16 %v1996, %v1994
    %v2051 = vpack.c.b16 %v1999, %v1997
    %v2052 = vpack.c.b16 %v2000, %v1998
    %v2053 = vpack.c.b16 %v2003, %v2001
    %v2054 = vpack.c.b16 %v2004, %v2002
    %v2055 = vpack.c.b16 %v2007, %v2005
    %v2056 = vpack.c.b16 %v2008, %v2006
    %2105 = vmatprep.subr.bf16.mxu0 %v2010
    %2106 = vmatpush1.bf16.msra.mxu0 %v2009
    %2107 = vmatprep.subr.bf16.mxu0 %v2012
    %2108 = vmatpush1.bf16.msra.mxu0 %v2011
    %2109 = vmatprep.subr.bf16.mxu0 %v2014
    %2110 = vmatpush1.bf16.msra.mxu0 %v2013
    %2111 = vmatprep.subr.bf16.mxu0 %v2016
    %2112 = vmatpush1.bf16.msra.mxu0 %v2015
    %2113 = vmatprep.subr.bf16.mxu0 %v2018
    %2114 = vmatpush1.bf16.msra.mxu0 %v2017
    %2115 = vmatprep.subr.bf16.mxu0 %v2020
    %2116 = vmatpush1.bf16.msra.mxu0 %v2019
    %2117 = vmatprep.subr.bf16.mxu0 %v2022
    %2118 = vmatpush1.bf16.msra.mxu0 %v2021
    %2119 = vmatprep.subr.bf16.mxu0 %v2024
    %2120 = vmatpush1.bf16.msra.mxu0 %v2023
    %2121 = vmatprep.subr.bf16.mxu0 %v2026
    %2122 = vmatpush1.bf16.msra.mxu0 %v2025
    %2123 = vmatprep.subr.bf16.mxu0 %v2028
    %2124 = vmatpush1.bf16.msra.mxu0 %v2027
    %2125 = vmatprep.subr.bf16.mxu0 %v2030
    %2126 = vmatpush1.bf16.msra.mxu0 %v2029
    %2127 = vmatprep.subr.bf16.mxu0 %v2032
    %2128 = vmatpush1.bf16.msra.mxu0 %v2031
    %2129 = vmatprep.subr.bf16.mxu0 %v2034
    %2130 = vmatpush1.bf16.msra.mxu0 %v2033
    %2131 = vmatprep.subr.bf16.mxu0 %v2036
    %2132 = vmatpush1.bf16.msra.mxu0 %v2035
    %2133 = vmatprep.subr.bf16.mxu0 %v2038
    %2134 = vmatpush1.bf16.msra.mxu0 %v2037
    %2135 = vmatprep.subr.bf16.mxu0 %v2040
    %2136 = vmatpush1.bf16.msra.mxu0 %v2039
    %2137 = vmatprep.mubr.bf16.mxu0 %v1815
    %2138 = vmatmul.mubr.bf16.gmra.mrb[0].mxu0 %v1814
    %v2139 = vpop.f32.mrb[0].mxu0
    %v2140 = vadd.f32 0.0, %v2139
    %v2141 = vpop.f32.mrb[0].mxu0
    %v2142 = vadd.f32 0.0, %v2141
    %v2143 = vpop.f32.mrb[0].mxu0
    %v2144 = vpop.f32.mrb[0].mxu0
    %2145 = vdwg.mxu0
    %2146 = vmatprep.subr.bf16.mxu0 %v2042
    %2147 = vmatpush1.bf16.msra.mxu0 %v2041
    %2148 = vmatprep.subr.bf16.mxu0 %v2044
    %2149 = vmatpush1.bf16.msra.mxu0 %v2043
    %2150 = vmatprep.subr.bf16.mxu0 %v2046
    %2151 = vmatpush1.bf16.msra.mxu0 %v2045
    %2152 = vmatprep.subr.bf16.mxu0 %v2048
    %2153 = vmatpush1.bf16.msra.mxu0 %v2047
    %2154 = vmatprep.subr.bf16.mxu0 %v2050
    %2155 = vmatpush1.bf16.msra.mxu0 %v2049
    %2156 = vmatprep.subr.bf16.mxu0 %v2052
    %2157 = vmatpush1.bf16.msra.mxu0 %v2051
    %2158 = vmatprep.subr.bf16.mxu0 %v2054
    %2159 = vmatpush1.bf16.msra.mxu0 %v2053
    %2160 = vmatprep.subr.bf16.mxu0 %v2056
    %2161 = vmatpush1.bf16.msra.mxu0 %v2055
    %2162 = vmatprep.subr.bf16.mxu0 0
    %2163 = vmatpush1.bf16.msra.mxu0 0
    %2164 = vmatprep.subr.bf16.mxu0 0
    %2165 = vmatpush1.bf16.msra.mxu0 0
    %2166 = vmatprep.subr.bf16.mxu0 0
    %2167 = vmatpush1.bf16.msra.mxu0 0
    %2168 = vmatprep.subr.bf16.mxu0 0
    %2169 = vmatpush1.bf16.msra.mxu0 0
    %2170 = vmatprep.subr.bf16.mxu0 0
    %2171 = vmatpush1.bf16.msra.mxu0 0
    %2172 = vmatprep.subr.bf16.mxu0 0
    %2173 = vmatpush1.bf16.msra.mxu0 0
    %2174 = vmatprep.subr.bf16.mxu0 0
    %2175 = vmatpush1.bf16.msra.mxu0 0
    %2176 = vmatprep.subr.bf16.mxu0 0
    %2177 = vmatpush1.bf16.msra.mxu0 0
    %2178 = vmatprep.mubr.bf16.mxu0 0
    %2179 = vmatmul.mubr.bf16.gmra.mrb[0].mxu0 %v1816
    %v2180 = vpop.f32.mrb[0].mxu0
    %v2181 = vadd.f32 %v2140, %v2180
    %v2182 = vpop.f32.mrb[0].mxu0
    %v2183 = vadd.f32 %v2142, %v2182
    %v2184 = vpop.f32.mrb[0].mxu0
    %v2185 = vpop.f32.mrb[0].mxu0
    %2186 = vdwg.mxu0
    %v2188 = vunpack.c.l.b16 %v1813
    %v2189 = vunpack.c.h.b16 %v1813
    %v2190 = vpack.c.b16 %v2188, %v2188
    %v2191 = vpack.c.b16 %v2189, %v2189
    %vm2192 = vcmask 64512
    %v2194 = vsel %vm2192, %v1812, 0
    %vm2196 = vcmask 1043456
    %v2198 = vsel %vm2196, %v2190, 0
    %v2201 = vsel %vm2196, %v2191, 0
    %2203 = vmatprep.subr.bf16.mxu0 %v2201
    %2204 = vmatpush1.bf16.msra.mxu0 %v2198
    %2205 = vmatprep.subr.bf16.mxu0 0
    %2206 = vmatpush1.bf16.msra.mxu0 0
    %2207 = vmatprep.subr.bf16.mxu0 0
    %2208 = vmatpush1.bf16.msra.mxu0 0
    %2209 = vmatprep.subr.bf16.mxu0 0
    %2210 = vmatpush1.bf16.msra.mxu0 0
    %2211 = vmatprep.subr.bf16.mxu0 0
    %2212 = vmatpush1.bf16.msra.mxu0 0
    %2213 = vmatprep.subr.bf16.mxu0 0
    %2214 = vmatpush1.bf16.msra.mxu0 0
    %2215 = vmatprep.subr.bf16.mxu0 0
    %2216 = vmatpush1.bf16.msra.mxu0 0
    %2217 = vmatprep.subr.bf16.mxu0 0
    %2218 = vmatpush1.bf16.msra.mxu0 0
    %2219 = vmatprep.subr.bf16.mxu0 0
    %2220 = vmatpush1.bf16.msra.mxu0 0
    %2221 = vmatprep.subr.bf16.mxu0 0
    %2222 = vmatpush1.bf16.msra.mxu0 0
    %2223 = vmatprep.subr.bf16.mxu0 0
    %2224 = vmatpush1.bf16.msra.mxu0 0
    %2225 = vmatprep.subr.bf16.mxu0 0
    %2226 = vmatpush1.bf16.msra.mxu0 0
    %2227 = vmatprep.subr.bf16.mxu0 0
    %2228 = vmatpush1.bf16.msra.mxu0 0
    %2229 = vmatprep.subr.bf16.mxu0 0
    %2230 = vmatpush1.bf16.msra.mxu0 0
    %2231 = vmatprep.subr.bf16.mxu0 0
    %2232 = vmatpush1.bf16.msra.mxu0 0
    %2233 = vmatprep.subr.bf16.mxu0 0
    %2234 = vmatpush1.bf16.msra.mxu0 0
    %2235 = vmatprep.mubr.bf16.mxu0 0
    %2236 = vmatmul.mubr.bf16.gmra.mrb[0].mxu0 %v2194
    %v2237 = vpop.f32.mrb[0].mxu0
    %v2238 = vadd.f32 %v2181, %v2237
    %v2239 = vpop.f32.mrb[0].mxu0
    %v2240 = vadd.f32 %v2183, %v2239
    %v2241 = vpop.f32.mrb[0].mxu0
    %v2242 = vpop.f32.mrb[0].mxu0
    %2243 = vdwg.mxu0
    %v2245 = vlaneseq
    %v2246 = vshrl.u32 %v2245, 7
    %v2247 = vsub.s32 0, %v2246
    %v2248 = vrot.slane %v73, %v2247
    %v2249 = vlaneseq
    %v2250 = vshrl.u32 %v2249, 7
    %v2251 = vsub.s32 1, %v2250
    %v2252 = vrot.slane %v73, %v2251
    %v2255 = vadd.f32 %v2238, %v2248
    %v2256 = vadd.f32 %v2240, %v2252
    %v2257 = vmax.f32 %v2255, 0.0
    %v2258 = vmax.f32 %v2256, 0.0
    %v2259 = vpack.c.bf16 %v2257, %v2257
    %v2260 = vpack.c.bf16 %v2258, %v2258
    %v2261 = vld [vmem:[%s6] sm:$0xf]
    %v2262 = vld [vmem:[%s6 + $0x4] sm:$0xf]
    %v2263 = vld [vmem:[%s6 + $0x8] sm:$0xf]
    %v2264 = vld [vmem:[%s6 + $0xc] sm:$0xf]
    %v2265 = vld [vmem:[%s6 + $0x10] sm:$0xf]
    %v2266 = vld [vmem:[%s6 + $0x14] sm:$0xf]
    %v2267 = vld [vmem:[%s6 + $0x18] sm:$0xf]
    %v2268 = vld [vmem:[%s6 + $0x1c] sm:$0xf]
    %v2269 = vld [vmem:[%s6 + $0x20] sm:$0xf]
    %v2270 = vld [vmem:[%s6 + $0x24] sm:$0xf]
    %v2271 = vld [vmem:[%s6 + $0x28] sm:$0xf]
    %v2272 = vld [vmem:[%s6 + $0x2c] sm:$0xf]
    %v2273 = vld [vmem:[%s6 + $0x30] sm:$0xf]
    %v2274 = vld [vmem:[%s6 + $0x34] sm:$0xf]
    %v2275 = vld [vmem:[%s6 + $0x38] sm:$0xf]
    %v2276 = vld [vmem:[%s6 + $0x3c] sm:$0xf]
    %v2277 = vld [vmem:[%s6 + $0x40] sm:$0xf]
    %v2278 = vld [vmem:[%s6 + $0x44] sm:$0xf]
    %v2279 = vld [vmem:[%s6 + $0x48] sm:$0xf]
    %v2280 = vld [vmem:[%s6 + $0x4c] sm:$0xf]
    %v2281 = vld [vmem:[%s6 + $0x50] sm:$0xf]
    %v2282 = vld [vmem:[%s6 + $0x54] sm:$0xf]
    %v2283 = vld [vmem:[%s6 + $0x58] sm:$0xf]
    %v2284 = vld [vmem:[%s6 + $0x5c] sm:$0xf]
    %v2285 = vld [vmem:[%s6 + $0x60] sm:$0xf]
    %v2286 = vld [vmem:[%s6 + $0x64] sm:$0xf]
    %v2287 = vld [vmem:[%s6 + $0x68] sm:$0xf]
    %v2288 = vld [vmem:[%s6 + $0x6c] sm:$0xf]
    %v2289 = vld [vmem:[%s6 + $0x70] sm:$0xf]
    %v2290 = vld [vmem:[%s6 + $0x74] sm:$0xf]
    %v2291 = vld [vmem:[%s6 + $0x78] sm:$0xf]
    %v2292 = vld [vmem:[%s6 + $0x7c] sm:$0xf]
    %v2294 = vlaneseq
    %v2295 = vshrl.u32 %v2294, 7
    %v2296 = vsub.s32 0, %v2295
    %v2297 = vrot.slane %v74, %v2296
    %v2331 = vunpack.c.l.b16 %v2261
    %v2332 = vunpack.c.l.b16 %v2262
    %v2333 = vunpack.c.l.b16 %v2263
    %v2334 = vunpack.c.l.b16 %v2264
    %v2335 = vunpack.c.l.b16 %v2265
    %v2336 = vunpack.c.l.b16 %v2266
    %v2337 = vunpack.c.l.b16 %v2267
    %v2338 = vunpack.c.l.b16 %v2268
    %v2339 = vunpack.c.l.b16 %v2269
    %v2340 = vunpack.c.l.b16 %v2270
    %v2341 = vunpack.c.l.b16 %v2271
    %v2342 = vunpack.c.l.b16 %v2272
    %v2343 = vunpack.c.l.b16 %v2273
    %v2344 = vunpack.c.l.b16 %v2274
    %v2345 = vunpack.c.l.b16 %v2275
    %v2346 = vunpack.c.l.b16 %v2276
    %v2347 = vunpack.c.l.b16 %v2277
    %v2348 = vunpack.c.l.b16 %v2278
    %v2349 = vunpack.c.l.b16 %v2279
    %v2350 = vunpack.c.l.b16 %v2280
    %v2351 = vunpack.c.l.b16 %v2281
    %v2352 = vunpack.c.l.b16 %v2282
    %v2353 = vunpack.c.l.b16 %v2283
    %v2354 = vunpack.c.l.b16 %v2284
    %v2355 = vunpack.c.l.b16 %v2285
    %v2356 = vunpack.c.l.b16 %v2286
    %v2357 = vunpack.c.l.b16 %v2287
    %v2358 = vunpack.c.l.b16 %v2288
    %v2359 = vunpack.c.l.b16 %v2289
    %v2360 = vunpack.c.l.b16 %v2290
    %v2361 = vunpack.c.l.b16 %v2291
    %v2362 = vunpack.c.l.b16 %v2292
    %v2363 = vpack.c.b16 %v2332, %v2331
    %v2364 = vpack.c.b16 %v2334, %v2333
    %v2365 = vpack.c.b16 %v2336, %v2335
    %v2366 = vpack.c.b16 %v2338, %v2337
    %v2367 = vpack.c.b16 %v2340, %v2339
    %v2368 = vpack.c.b16 %v2342, %v2341
    %v2369 = vpack.c.b16 %v2344, %v2343
    %v2370 = vpack.c.b16 %v2346, %v2345
    %v2371 = vpack.c.b16 %v2348, %v2347
    %v2372 = vpack.c.b16 %v2350, %v2349
    %v2373 = vpack.c.b16 %v2352, %v2351
    %v2374 = vpack.c.b16 %v2354, %v2353
    %v2375 = vpack.c.b16 %v2356, %v2355
    %v2376 = vpack.c.b16 %v2358, %v2357
    %v2377 = vpack.c.b16 %v2360, %v2359
    %v2378 = vpack.c.b16 %v2362, %v2361
    %2395 = vmatprep.subr.bf16.mxu0 0
    %2396 = vmatpush1.bf16.msra.mxu0 %v2363
    %2397 = vmatprep.subr.bf16.mxu0 0
    %2398 = vmatpush1.bf16.msra.mxu0 %v2364
    %2399 = vmatprep.subr.bf16.mxu0 0
    %2400 = vmatpush1.bf16.msra.mxu0 %v2365
    %2401 = vmatprep.subr.bf16.mxu0 0
    %2402 = vmatpush1.bf16.msra.mxu0 %v2366
    %2403 = vmatprep.subr.bf16.mxu0 0
    %2404 = vmatpush1.bf16.msra.mxu0 %v2367
    %2405 = vmatprep.subr.bf16.mxu0 0
    %2406 = vmatpush1.bf16.msra.mxu0 %v2368
    %2407 = vmatprep.subr.bf16.mxu0 0
    %2408 = vmatpush1.bf16.msra.mxu0 %v2369
    %2409 = vmatprep.subr.bf16.mxu0 0
    %2410 = vmatpush1.bf16.msra.mxu0 %v2370
    %2411 = vmatprep.subr.bf16.mxu0 0
    %2412 = vmatpush1.bf16.msra.mxu0 %v2371
    %2413 = vmatprep.subr.bf16.mxu0 0
    %2414 = vmatpush1.bf16.msra.mxu0 %v2372
    %2415 = vmatprep.subr.bf16.mxu0 0
    %2416 = vmatpush1.bf16.msra.mxu0 %v2373
    %2417 = vmatprep.subr.bf16.mxu0 0
    %2418 = vmatpush1.bf16.msra.mxu0 %v2374
    %2419 = vmatprep.subr.bf16.mxu0 0
    %2420 = vmatpush1.bf16.msra.mxu0 %v2375
    %2421 = vmatprep.subr.bf16.mxu0 0
    %2422 = vmatpush1.bf16.msra.mxu0 %v2376
    %2423 = vmatprep.subr.bf16.mxu0 0
    %2424 = vmatpush1.bf16.msra.mxu0 %v2377
    %2425 = vmatprep.subr.bf16.mxu0 0
    %2426 = vmatpush1.bf16.msra.mxu0 %v2378
    %2427 = vmatprep.mubr.bf16.mxu0 %v2260
    %2428 = vmatmul.mubr.bf16.gmra.mrb[0].mxu0 %v2259
    %v2429 = vpop.f32.mrb[0].mxu0
    %v2430 = vadd.f32 %v2297, %v2429
    %v2431 = vpop.f32.mrb[0].mxu0
    %v2432 = vpop.f32.mrb[0].mxu0
    %v2433 = vpop.f32.mrb[0].mxu0
    %2434 = vdwg.mxu0
    %vm2435 = vcmask 31744
    %2436 = vst.msk [vmem:[%s8] sm:$0xff] %vm2435, %v2430
    // Predicated region
    $region46: #{pi_vision_forward.1} parent=1 // pred_check
      _
    $region47: #{pi_vision_forward.1} parent=1 // pred_check_branch
      %2438 = sbr.rel (0) target = $region49
    $region48: #{pi_vision_forward.1} parent=1 // pred_region
      _
    $region49: #{pi_vision_forward.1} parent=1 // pred_fallthru
      _
    // Predicated region
    $region50: #{pi_vision_forward.1} parent=1 // pred_check
      _
    $region51: #{pi_vision_forward.1} parent=1 // pred_check_branch
      %2440 = sbr.rel (0) target = $region53
    $region52: #{pi_vision_forward.1} parent=1 // pred_region
      _
    $region53: #{pi_vision_forward.1} parent=1 // pred_fallthru
      _
    %2441 = vsyncpa [#allocation3], 1
    %2442 = vsyncpa [#allocation5], 1

</llo_original>
